<compile_context>
chip_gen: v7x
topology: tpu7x:2x2x1
jax: 0.10.0
libtpu: 0.0.40
codegen_flags: <defaults>
</compile_context>

<pallas_src>
import math

import jax
import jax.numpy as jnp
from jax import lax
from jax.experimental import pallas as pl
from jax.experimental.pallas import tpu as pltpu


def _round_up(x, m):
    return ((x + m - 1) // m) * m


def _bf16_eup_available():
    """bf16 VPU/EUP exists on v6e/v7x but not v5e (nor older)."""
    try:
        kind = jax.devices()[0].device_kind.lower()
        return ("v6" in kind) or ("v7" in kind)
    except Exception:
        return False


def _make_attn_kernel(nhead, head_dim, scale, s_valid, tk, needs_kv_mask, bf16_exp):
    """Flash-attention forward kernel over one (batch, q-block) with kv-block loop."""
    D = head_dim

    def kernel(q_ref, k_ref, v_ref, o_ref, m_sc, l_sc, acc_sc, q_sc):
        ki = pl.program_id(2)
        last = pl.num_programs(2) - 1

        @pl.when(ki == 0)
        def _():
            m_sc[...] = jnp.full_like(m_sc, -jnp.inf)
            l_sc[...] = jnp.zeros_like(l_sc)
            acc_sc[...] = jnp.zeros_like(acc_sc)
            # Hoisted Q preprocessing: scale (fp32) + per-head slice + bf16 cast,
            # done once per q-block instead of once per kv step per head.
            q = q_ref[0]                                    # (tq, C) bf16
            for h in range(nhead):
                q_sc[h] = (q[:, h * D:(h + 1) * D].astype(jnp.float32)
                           * scale).astype(jnp.bfloat16)

        def kv_step(masked):
            k = k_ref[0]                                    # (tk, C) bf16
            v = v_ref[0]                                    # (tk, C) bf16
            ones_col = jnp.ones((tk, 1), dtype=jnp.bfloat16)
            if masked:
                col = ki * tk + lax.broadcasted_iota(jnp.int32, (1, tk), 1)
                kv_valid = col < s_valid                    # (1, tk)

            for h in range(nhead):
                sl = slice(h * D, (h + 1) * D)
                qh = q_sc[h]                                # (tq, D) bf16, pre-scaled
                kh = k[:, sl]                               # (tk, D) bf16
                vh = v[:, sl]                               # (tk, D) bf16

                # (tq, tk) scores, fp32 accumulation, no explicit transpose of K.
                s = lax.dot_general(
                    qh, kh, (((1,), (1,)), ((), ())),
                    preferred_element_type=jnp.float32)
                if masked:
                    s = jnp.where(kv_valid, s, -1e30)

                m_prev = m_sc[h]                            # (tq, 1) fp32
                m_new = jnp.maximum(m_prev, s.max(axis=-1, keepdims=True))
                alpha = jnp.exp(m_prev - m_new)             # (tq, 1) fp32
                d = s - m_new
                if bf16_exp:
                    p = jnp.exp(d.astype(jnp.bfloat16))     # bf16 EUP exp (v6e/v7x)
                else:
                    p = jnp.exp(d).astype(jnp.bfloat16)     # fp32 exp (v5e), single cast

                # Fuse the row-sum of P into the P@V matmul: extra ones column of V
                # yields l-delta in fp32 from the MXU -> no (tq, tk) XLU reduce and
                # no fp32 P temporary.
                v_ones = jnp.concatenate([vh, ones_col], axis=-1)   # (tk, D+1) bf16
                pv = jnp.dot(p, v_ones,
                             preferred_element_type=jnp.float32)    # (tq, D+1) fp32

                acc_sc[h] = alpha * acc_sc[h] + pv[:, :D]
                l_sc[h] = alpha * l_sc[h] + pv[:, D:]
                m_sc[h] = m_new

        if needs_kv_mask:
            # Only the last kv block has padded columns -> pay the mask only there.
            @pl.when(ki != last)
            def _():
                kv_step(False)

            @pl.when(ki == last)
            def _():
                kv_step(True)
        else:
            kv_step(False)

        @pl.when(ki == last)
        def _():
            outs = []
            for h in range(nhead):
                inv = pl.reciprocal(l_sc[h], approx=False)  # once per q-block: ~free
                outs.append(acc_sc[h] * inv)
            # single lane-dense (tq, nhead*head_dim) store
            o_ref[0] = jnp.concatenate(outs, axis=-1).astype(o_ref.dtype)

    return kernel


def _sdpa_pallas(q, k, v, nhead, head_dim, *, tq=256, tk=512, bf16_exp=None):
    """q: (N, L, C), k/v: (N, S, C), C = nhead*head_dim -> (N, L, C)."""
    N, L, C = q.shape
    S = k.shape[1]
    assert C == nhead * head_dim
    assert k.shape == (N, S, C) and v.shape == (N, S, C)

    out_dtype = q.dtype
    if bf16_exp is None:
        bf16_exp = _bf16_eup_available()

    # bf16 MXU inputs cast once in the wrapper: halves the K/V HBM re-stream
    # (K/V are re-read L_pad/tq times) and halves every VMEM input block.
    q = q.astype(jnp.bfloat16)
    k = k.astype(jnp.bfloat16)
    v = v.astype(jnp.bfloat16)

    # Clamp tiles to the (sublane-rounded) problem size; pad ragged dims.
    # NOTE(v7x megacore): keep L_pad//tq >= 2 when N == 1 so both TCs have work.
    tq = _round_up(min(tq, L), 8)
    tk = _round_up(min(tk, S), 8)
    L_pad = _round_up(L, tq)
    S_pad = _round_up(S, tk)

    if L_pad != L:
        q = jnp.pad(q, ((0, 0), (0, L_pad - L), (0, 0)))
    if S_pad != S:
        k = jnp.pad(k, ((0, 0), (0, S_pad - S), (0, 0)))
        v = jnp.pad(v, ((0, 0), (0, S_pad - S), (0, 0)))
    needs_kv_mask = S_pad != S

    scale = 1.0 / math.sqrt(head_dim)
    kernel = _make_attn_kernel(nhead, head_dim, scale, S, tk, needs_kv_mask, bf16_exp)

    out = pl.pallas_call(
        kernel,
        out_shape=jax.ShapeDtypeStruct((N, L_pad, C), out_dtype),
        grid_spec=pltpu.PrefetchScalarGridSpec(
            num_scalar_prefetch=0,
            grid=(N, L_pad // tq, S_pad // tk),
            in_specs=[
                pl.BlockSpec((1, tq, C), lambda b, qi, ki: (b, qi, 0)),
                pl.BlockSpec((1, tk, C), lambda b, qi, ki: (b, ki, 0)),
                pl.BlockSpec((1, tk, C), lambda b, qi, ki: (b, ki, 0)),
            ],
            out_specs=pl.BlockSpec((1, tq, C), lambda b, qi, ki: (b, qi, 0)),
            scratch_shapes=[
                pltpu.VMEM((nhead, tq, 1), jnp.float32),           # running max
                pltpu.VMEM((nhead, tq, 1), jnp.float32),           # running sum
                pltpu.VMEM((nhead, tq, head_dim), jnp.float32),    # output accumulator
                pltpu.VMEM((nhead, tq, head_dim), jnp.bfloat16),   # pre-scaled Q tile
            ],
        ),
        compiler_params=pltpu.CompilerParams(
            dimension_semantics=("parallel", "parallel", "arbitrary"),
        ),
    )(q, k, v)

    if L_pad != L:
        out = out[:, :L, :]
    return out


def attention_forward(query, key, value, nhead, head_dim, *, tq=256, tk=512,
                      bf16_exp=None):
    """JAX/Pallas equivalent of Attention.forward with q_mask=None.

    query/key/value: [N, H, W, nhead*head_dim]  (C should ideally be a multiple of
    128 for fully lane-dense loads/stores; real LoFTR C=256 is).
    returns:         [N, H*W, nhead, head_dim]
    """
    n, hq, wq, c = query.shape
    assert c == nhead * head_dim
    L = hq * wq
    S = key.shape[1] * key.shape[2]

    # Free reshapes only -- no transposes / extra HBM passes in the wrapper.
    q = query.reshape(n, L, c)
    k = key.reshape(n, S, c)
    v = value.reshape(n, S, c)

    o = _sdpa_pallas(q, k, v, nhead, head_dim, tq=tq, tk=tk, bf16_exp=bf16_exp)
    return o.reshape(n, L, nhead, head_dim)


def _reference(query, key, value, nhead, head_dim):
    """Pure-JAX reference mirroring the PyTorch non-flash branch (fp32)."""
    n = query.shape[0]

    def rearr(x):
        return x.reshape(n, x.shape[1] * x.shape[2], nhead, head_dim)

    q, k, v = rearr(query), rearr(key), rearr(value)
    qk = jnp.einsum('nlhd,nshd->nlsh', q, k)
    temp = 1.0 / math.sqrt(head_dim)
    a = jax.nn.softmax(temp * qk, axis=2)
    return jnp.einsum('nlsh,nshd->nlhd', a, v)


if __name__ == "__main__":
    # --- Test 1: small shapes consistent with 'n h w (nhead d)' input ---
    N, Himg, Wimg = 2, 8, 8
    NHEAD, HEAD_DIM = 2, 32
    C = NHEAD * HEAD_DIM

    key0 = jax.random.PRNGKey(0)
    kq, kk, kv = jax.random.split(key0, 3)
    query = jax.random.normal(kq, (N, Himg, Wimg, C), dtype=jnp.float32)
    key_ = jax.random.normal(kk, (N, Himg, Wimg, C), dtype=jnp.float32)
    value = jax.random.normal(kv, (N, Himg, Wimg, C), dtype=jnp.float32)

    out = attention_forward(query, key_, value, NHEAD, HEAD_DIM)
    out = jax.block_until_ready(out)

    ref = _reference(query, key_, value, NHEAD, HEAD_DIM)
    assert out.shape == (N, Himg * Wimg, NHEAD, HEAD_DIM), out.shape
    # bf16 MXU inputs / bf16 probability tile (fp32 accumulation) -> relaxed
    # tolerance vs fp32 reference.
    assert jnp.allclose(out, ref, atol=5e-2, rtol=5e-2), float(
        jnp.max(jnp.abs(out - ref)))

    # --- Test 2: ragged shapes exercising padding + last-block KV masking
    #             + multi-block grid (both masked and unmasked kv branches) ---
    N2, H2, W2 = 1, 6, 10            # L = S = 60, not a multiple of the 32-tile
    kq2, kk2, kv2 = jax.random.split(jax.random.PRNGKey(1), 3)
    q2 = jax.random.normal(kq2, (N2, H2, W2, C), dtype=jnp.float32)
    k2 = jax.random.normal(kk2, (N2, H2, W2, C), dtype=jnp.float32)
    v2 = jax.random.normal(kv2, (N2, H2, W2, C), dtype=jnp.float32)

    out2 = attention_forward(q2, k2, v2, NHEAD, HEAD_DIM, tq=32, tk=32)
    out2 = jax.block_until_ready(out2)
    ref2 = _reference(q2, k2, v2, NHEAD, HEAD_DIM)
    assert out2.shape == (N2, H2 * W2, NHEAD, HEAD_DIM), out2.shape
    assert jnp.allclose(out2, ref2, atol=5e-2, rtol=5e-2), float(
        jnp.max(jnp.abs(out2 - ref2)))

    # TODO(synk): the q_mask/kv_mask crop_feature/pad_feature path is host-side
    # slicing bookkeeping around the same attention core and is not implemented here.
    print("KERNEL_OK")
</pallas_src>

<mosaic_0001>
module attributes {stable_mosaic.version = 11 : i64} {
  func.func @kernel(%arg0: i32, %arg1: i32, %arg2: i32, %arg3: memref<1x64x64xbf16, #tpu.memory_space<vmem>>, %arg4: memref<1x64x64xbf16, #tpu.memory_space<vmem>>, %arg5: memref<1x64x64xbf16, #tpu.memory_space<vmem>>, %arg6: memref<1x64x64xf32, #tpu.memory_space<vmem>>, %arg7: memref<2x64x1xf32, #tpu.memory_space<vmem>>, %arg8: memref<2x64x1xf32, #tpu.memory_space<vmem>>, %arg9: memref<2x64x32xf32, #tpu.memory_space<vmem>>, %arg10: memref<2x64x32xbf16, #tpu.memory_space<vmem>>) attributes {dimension_semantics = [#tpu.dimension_semantics<parallel>, #tpu.dimension_semantics<parallel>, #tpu.dimension_semantics<arbitrary>], iteration_bounds = array<i64: 2, 1, 1>, scalar_prefetch = 0 : i64, scratch_operands = 4 : i64, tpu.core_type = #tpu.core_type<tc>, window_params = [{transform_indices = @transform_0, window_bounds = array<i64: 1, 64, 64>}, {transform_indices = @transform_1, window_bounds = array<i64: 1, 64, 64>}, {transform_indices = @transform_2, window_bounds = array<i64: 1, 64, 64>}, {transform_indices = @transform_3, window_bounds = array<i64: 1, 64, 64>}]} {
    %c0_i32 = arith.constant 0 : i32
    %0 = arith.cmpi eq, %arg2, %c0_i32 : i32
    %1 = arith.extui %0 : i1 to i32
    %c0_i32_0 = arith.constant 0 : i32
    %2 = arith.cmpi ne, %1, %c0_i32_0 : i32
    scf.if %2 {
      %cst_55 = arith.constant 0xFF800000 : f32
      %87 = vector.broadcast %cst_55 : f32 to vector<2x64x1xf32>
      %c0_56 = arith.constant 0 : index
      %c0_57 = arith.constant 0 : index
      %c0_58 = arith.constant 0 : index
      %88 = vector.load %arg7[%c0_56, %c0_57, %c0_58] : memref<2x64x1xf32, #tpu.memory_space<vmem>>, vector<2x64x1xf32>
      tpu.vector_store %arg7[%c0_56, %c0_57, %c0_58], %87 {strides = array<i32>} : memref<2x64x1xf32, #tpu.memory_space<vmem>>, vector<2x64x1xf32>,
      %cst_59 = arith.constant 0.000000e+00 : f32
      %89 = vector.broadcast %cst_59 : f32 to vector<2x64x1xf32>
      %c0_60 = arith.constant 0 : index
      %c0_61 = arith.constant 0 : index
      %c0_62 = arith.constant 0 : index
      %90 = vector.load %arg8[%c0_60, %c0_61, %c0_62] : memref<2x64x1xf32, #tpu.memory_space<vmem>>, vector<2x64x1xf32>
      tpu.vector_store %arg8[%c0_60, %c0_61, %c0_62], %89 {strides = array<i32>} : memref<2x64x1xf32, #tpu.memory_space<vmem>>, vector<2x64x1xf32>,
      %cst_63 = arith.constant 0.000000e+00 : f32
      %91 = vector.broadcast %cst_63 : f32 to vector<2x64x32xf32>
      %c0_64 = arith.constant 0 : index
      %c0_65 = arith.constant 0 : index
      %c0_66 = arith.constant 0 : index
      %92 = vector.load %arg9[%c0_64, %c0_65, %c0_66] : memref<2x64x32xf32, #tpu.memory_space<vmem>>, vector<2x64x32xf32>
      tpu.vector_store %arg9[%c0_64, %c0_65, %c0_66], %91 {strides = array<i32>} : memref<2x64x32xf32, #tpu.memory_space<vmem>>, vector<2x64x32xf32>,
      %c0_67 = arith.constant 0 : index
      %c0_68 = arith.constant 0 : index
      %c0_69 = arith.constant 0 : index
      %93 = vector.load %arg3[%c0_67, %c0_68, %c0_69] : memref<1x64x64xbf16, #tpu.memory_space<vmem>>, vector<1x64x64xbf16>
      %94 = vector.shape_cast %93 : vector<1x64x64xbf16> to vector<64x64xbf16>
      %95 = vector.extract_strided_slice %94 {offsets = [0, 0], sizes = [64, 32], strides = [1, 1]} : vector<64x64xbf16> to vector<64x32xbf16>
      %96 = arith.extf %95 : vector<64x32xbf16> to vector<64x32xf32>
      %cst_70 = arith.constant 0.176776692 : f32
      %97 = vector.broadcast %cst_70 : f32 to vector<64x32xf32>
      %98 = arith.mulf %96, %97 : vector<64x32xf32>
      %99 = arith.truncf %98 : vector<64x32xf32> to vector<64x32xbf16>
      %c0_71 = arith.constant 0 : index
      %c0_72 = arith.constant 0 : index
      %c0_73 = arith.constant 0 : index
      %100 = vector.load %arg10[%c0_71, %c0_72, %c0_73] : memref<2x64x32xbf16, #tpu.memory_space<vmem>>, vector<1x64x32xbf16>
      %101 = vector.shape_cast %100 : vector<1x64x32xbf16> to vector<64x32xbf16>
      %102 = vector.shape_cast %99 : vector<64x32xbf16> to vector<1x64x32xbf16>
      tpu.vector_store %arg10[%c0_71, %c0_72, %c0_73], %102 {strides = array<i32>} : memref<2x64x32xbf16, #tpu.memory_space<vmem>>, vector<1x64x32xbf16>,
      %103 = vector.extract_strided_slice %94 {offsets = [0, 32], sizes = [64, 32], strides = [1, 1]} : vector<64x64xbf16> to vector<64x32xbf16>
      %104 = arith.extf %103 : vector<64x32xbf16> to vector<64x32xf32>
      %cst_74 = arith.constant 0.176776692 : f32
      %105 = vector.broadcast %cst_74 : f32 to vector<64x32xf32>
      %106 = arith.mulf %104, %105 : vector<64x32xf32>
      %107 = arith.truncf %106 : vector<64x32xf32> to vector<64x32xbf16>
      %c1_75 = arith.constant 1 : index
      %c0_76 = arith.constant 0 : index
      %c0_77 = arith.constant 0 : index
      %108 = vector.load %arg10[%c1_75, %c0_76, %c0_77] : memref<2x64x32xbf16, #tpu.memory_space<vmem>>, vector<1x64x32xbf16>
      %109 = vector.shape_cast %108 : vector<1x64x32xbf16> to vector<64x32xbf16>
      %110 = vector.shape_cast %107 : vector<64x32xbf16> to vector<1x64x32xbf16>
      tpu.vector_store %arg10[%c1_75, %c0_76, %c0_77], %110 {strides = array<i32>} : memref<2x64x32xbf16, #tpu.memory_space<vmem>>, vector<1x64x32xbf16>,
    } else {
    }
    %c0 = arith.constant 0 : index
    %c0_1 = arith.constant 0 : index
    %c0_2 = arith.constant 0 : index
    %3 = vector.load %arg4[%c0, %c0_1, %c0_2] : memref<1x64x64xbf16, #tpu.memory_space<vmem>>, vector<1x64x64xbf16>
    %4 = vector.shape_cast %3 : vector<1x64x64xbf16> to vector<64x64xbf16>
    %c0_3 = arith.constant 0 : index
    %c0_4 = arith.constant 0 : index
    %c0_5 = arith.constant 0 : index
    %5 = vector.load %arg5[%c0_3, %c0_4, %c0_5] : memref<1x64x64xbf16, #tpu.memory_space<vmem>>, vector<1x64x64xbf16>
    %6 = vector.shape_cast %5 : vector<1x64x64xbf16> to vector<64x64xbf16>
    %cst = arith.constant 1.000000e+00 : bf16
    %7 = vector.broadcast %cst : bf16 to vector<64x1xbf16>
    %c0_6 = arith.constant 0 : index
    %c0_7 = arith.constant 0 : index
    %c0_8 = arith.constant 0 : index
    %8 = vector.load %arg10[%c0_6, %c0_7, %c0_8] : memref<2x64x32xbf16, #tpu.memory_space<vmem>>, vector<1x64x32xbf16>
    %9 = vector.shape_cast %8 : vector<1x64x32xbf16> to vector<64x32xbf16>
    %10 = vector.extract_strided_slice %4 {offsets = [0, 0], sizes = [64, 32], strides = [1, 1]} : vector<64x64xbf16> to vector<64x32xbf16>
    %11 = vector.extract_strided_slice %6 {offsets = [0, 0], sizes = [64, 32], strides = [1, 1]} : vector<64x64xbf16> to vector<64x32xbf16>
    %cst_9 = arith.constant dense<0.000000e+00> : vector<64x64xf32>
    %12 = tpu.matmul %9, %10, %cst_9 {dimension_numbers = #tpu.dot_dimension_numbers<[1], [1], [0], [0], [0, 0, 1, 0], [], []>} : vector<64x32xbf16>, vector<64x32xbf16>, vector<64x64xf32> -> vector<64x64xf32>
    %c0_10 = arith.constant 0 : index
    %c0_11 = arith.constant 0 : index
    %c0_12 = arith.constant 0 : index
    %13 = vector.load %arg7[%c0_10, %c0_11, %c0_12] : memref<2x64x1xf32, #tpu.memory_space<vmem>>, vector<1x64x1xf32>
    %14 = vector.shape_cast %13 : vector<1x64x1xf32> to vector<64x1xf32>
    %cst_13 = arith.constant dense<0xFF800000> : vector<64xf32>
    %15 = vector.multi_reduction <maximumf>, %12, %cst_13 [1] : vector<64x64xf32> to vector<64xf32>
    %16 = vector.shape_cast %15 : vector<64xf32> to vector<64x1xf32>
    %17 = arith.maximumf %14, %16 : vector<64x1xf32>
    %18 = arith.subf %14, %17 : vector<64x1xf32>
    %19 = math.exp %18 : vector<64x1xf32>
    %20 = vector.broadcast %17 : vector<64x1xf32> to vector<64x64xf32>
    %21 = arith.subf %12, %20 : vector<64x64xf32>
    %22 = math.exp %21 : vector<64x64xf32>
    %23 = arith.truncf %22 : vector<64x64xf32> to vector<64x64xbf16>
    %24 = tpu.concatenate %11, %7 in 1 : vector<64x32xbf16>, vector<64x1xbf16> -> vector<64x33xbf16>
    %cst_14 = arith.constant dense<0.000000e+00> : vector<64x33xf32>
    %25 = tpu.matmul %23, %24, %cst_14 {dimension_numbers = #tpu.dot_dimension_numbers<[1], [0], [0], [1], [0, 0, 1, 1], [], []>} : vector<64x64xbf16>, vector<64x33xbf16>, vector<64x33xf32> -> vector<64x33xf32>
    %c0_15 = arith.constant 0 : index
    %c0_16 = arith.constant 0 : index
    %c0_17 = arith.constant 0 : index
    %26 = vector.load %arg9[%c0_15, %c0_16, %c0_17] : memref<2x64x32xf32, #tpu.memory_space<vmem>>, vector<1x64x32xf32>
    %27 = vector.shape_cast %26 : vector<1x64x32xf32> to vector<64x32xf32>
    %28 = vector.broadcast %19 : vector<64x1xf32> to vector<64x32xf32>
    %29 = arith.mulf %28, %27 : vector<64x32xf32>
    %30 = vector.extract_strided_slice %25 {offsets = [0, 0], sizes = [64, 32], strides = [1, 1]} : vector<64x33xf32> to vector<64x32xf32>
    %31 = arith.addf %29, %30 : vector<64x32xf32>
    %c0_18 = arith.constant 0 : index
    %c0_19 = arith.constant 0 : index
    %c0_20 = arith.constant 0 : index
    %32 = vector.load %arg9[%c0_18, %c0_19, %c0_20] : memref<2x64x32xf32, #tpu.memory_space<vmem>>, vector<1x64x32xf32>
    %33 = vector.shape_cast %32 : vector<1x64x32xf32> to vector<64x32xf32>
    %34 = vector.shape_cast %31 : vector<64x32xf32> to vector<1x64x32xf32>
    tpu.vector_store %arg9[%c0_18, %c0_19, %c0_20], %34 {strides = array<i32>} : memref<2x64x32xf32, #tpu.memory_space<vmem>>, vector<1x64x32xf32>,
    %c0_21 = arith.constant 0 : index
    %c0_22 = arith.constant 0 : index
    %c0_23 = arith.constant 0 : index
    %35 = vector.load %arg8[%c0_21, %c0_22, %c0_23] : memref<2x64x1xf32, #tpu.memory_space<vmem>>, vector<1x64x1xf32>
    %36 = vector.shape_cast %35 : vector<1x64x1xf32> to vector<64x1xf32>
    %37 = arith.mulf %19, %36 : vector<64x1xf32>
    %38 = vector.extract_strided_slice %25 {offsets = [0, 32], sizes = [64, 1], strides = [1, 1]} : vector<64x33xf32> to vector<64x1xf32>
    %39 = arith.addf %37, %38 : vector<64x1xf32>
    %c0_24 = arith.constant 0 : index
    %c0_25 = arith.constant 0 : index
    %c0_26 = arith.constant 0 : index
    %40 = vector.load %arg8[%c0_24, %c0_25, %c0_26] : memref<2x64x1xf32, #tpu.memory_space<vmem>>, vector<1x64x1xf32>
    %41 = vector.shape_cast %40 : vector<1x64x1xf32> to vector<64x1xf32>
    %42 = vector.shape_cast %39 : vector<64x1xf32> to vector<1x64x1xf32>
    tpu.vector_store %arg8[%c0_24, %c0_25, %c0_26], %42 {strides = array<i32>} : memref<2x64x1xf32, #tpu.memory_space<vmem>>, vector<1x64x1xf32>,
    %c0_27 = arith.constant 0 : index
    %c0_28 = arith.constant 0 : index
    %c0_29 = arith.constant 0 : index
    %43 = vector.load %arg7[%c0_27, %c0_28, %c0_29] : memref<2x64x1xf32, #tpu.memory_space<vmem>>, vector<1x64x1xf32>
    %44 = vector.shape_cast %43 : vector<1x64x1xf32> to vector<64x1xf32>
    %45 = vector.shape_cast %17 : vector<64x1xf32> to vector<1x64x1xf32>
    tpu.vector_store %arg7[%c0_27, %c0_28, %c0_29], %45 {strides = array<i32>} : memref<2x64x1xf32, #tpu.memory_space<vmem>>, vector<1x64x1xf32>,
    %c1 = arith.constant 1 : index
    %c0_30 = arith.constant 0 : index
    %c0_31 = arith.constant 0 : index
    %46 = vector.load %arg10[%c1, %c0_30, %c0_31] : memref<2x64x32xbf16, #tpu.memory_space<vmem>>, vector<1x64x32xbf16>
    %47 = vector.shape_cast %46 : vector<1x64x32xbf16> to vector<64x32xbf16>
    %48 = vector.extract_strided_slice %4 {offsets = [0, 32], sizes = [64, 32], strides = [1, 1]} : vector<64x64xbf16> to vector<64x32xbf16>
    %49 = vector.extract_strided_slice %6 {offsets = [0, 32], sizes = [64, 32], strides = [1, 1]} : vector<64x64xbf16> to vector<64x32xbf16>
    %cst_32 = arith.constant dense<0.000000e+00> : vector<64x64xf32>
    %50 = tpu.matmul %47, %48, %cst_32 {dimension_numbers = #tpu.dot_dimension_numbers<[1], [1], [0], [0], [0, 0, 1, 0], [], []>} : vector<64x32xbf16>, vector<64x32xbf16>, vector<64x64xf32> -> vector<64x64xf32>
    %c1_33 = arith.constant 1 : index
    %c0_34 = arith.constant 0 : index
    %c0_35 = arith.constant 0 : index
    %51 = vector.load %arg7[%c1_33, %c0_34, %c0_35] : memref<2x64x1xf32, #tpu.memory_space<vmem>>, vector<1x64x1xf32>
    %52 = vector.shape_cast %51 : vector<1x64x1xf32> to vector<64x1xf32>
    %cst_36 = arith.constant dense<0xFF800000> : vector<64xf32>
    %53 = vector.multi_reduction <maximumf>, %50, %cst_36 [1] : vector<64x64xf32> to vector<64xf32>
    %54 = vector.shape_cast %53 : vector<64xf32> to vector<64x1xf32>
    %55 = arith.maximumf %52, %54 : vector<64x1xf32>
    %56 = arith.subf %52, %55 : vector<64x1xf32>
    %57 = math.exp %56 : vector<64x1xf32>
    %58 = vector.broadcast %55 : vector<64x1xf32> to vector<64x64xf32>
    %59 = arith.subf %50, %58 : vector<64x64xf32>
    %60 = math.exp %59 : vector<64x64xf32>
    %61 = arith.truncf %60 : vector<64x64xf32> to vector<64x64xbf16>
    %62 = tpu.concatenate %49, %7 in 1 : vector<64x32xbf16>, vector<64x1xbf16> -> vector<64x33xbf16>
    %cst_37 = arith.constant dense<0.000000e+00> : vector<64x33xf32>
    %63 = tpu.matmul %61, %62, %cst_37 {dimension_numbers = #tpu.dot_dimension_numbers<[1], [0], [0], [1], [0, 0, 1, 1], [], []>} : vector<64x64xbf16>, vector<64x33xbf16>, vector<64x33xf32> -> vector<64x33xf32>
    %c1_38 = arith.constant 1 : index
    %c0_39 = arith.constant 0 : index
    %c0_40 = arith.constant 0 : index
    %64 = vector.load %arg9[%c1_38, %c0_39, %c0_40] : memref<2x64x32xf32, #tpu.memory_space<vmem>>, vector<1x64x32xf32>
    %65 = vector.shape_cast %64 : vector<1x64x32xf32> to vector<64x32xf32>
    %66 = vector.broadcast %57 : vector<64x1xf32> to vector<64x32xf32>
    %67 = arith.mulf %66, %65 : vector<64x32xf32>
    %68 = vector.extract_strided_slice %63 {offsets = [0, 0], sizes = [64, 32], strides = [1, 1]} : vector<64x33xf32> to vector<64x32xf32>
    %69 = arith.addf %67, %68 : vector<64x32xf32>
    %c1_41 = arith.constant 1 : index
    %c0_42 = arith.constant 0 : index
    %c0_43 = arith.constant 0 : index
    %70 = vector.load %arg9[%c1_41, %c0_42, %c0_43] : memref<2x64x32xf32, #tpu.memory_space<vmem>>, vector<1x64x32xf32>
    %71 = vector.shape_cast %70 : vector<1x64x32xf32> to vector<64x32xf32>
    %72 = vector.shape_cast %69 : vector<64x32xf32> to vector<1x64x32xf32>
    tpu.vector_store %arg9[%c1_41, %c0_42, %c0_43], %72 {strides = array<i32>} : memref<2x64x32xf32, #tpu.memory_space<vmem>>, vector<1x64x32xf32>,
    %c1_44 = arith.constant 1 : index
    %c0_45 = arith.constant 0 : index
    %c0_46 = arith.constant 0 : index
    %73 = vector.load %arg8[%c1_44, %c0_45, %c0_46] : memref<2x64x1xf32, #tpu.memory_space<vmem>>, vector<1x64x1xf32>
    %74 = vector.shape_cast %73 : vector<1x64x1xf32> to vector<64x1xf32>
    %75 = arith.mulf %57, %74 : vector<64x1xf32>
    %76 = vector.extract_strided_slice %63 {offsets = [0, 32], sizes = [64, 1], strides = [1, 1]} : vector<64x33xf32> to vector<64x1xf32>
    %77 = arith.addf %75, %76 : vector<64x1xf32>
    %c1_47 = arith.constant 1 : index
    %c0_48 = arith.constant 0 : index
    %c0_49 = arith.constant 0 : index
    %78 = vector.load %arg8[%c1_47, %c0_48, %c0_49] : memref<2x64x1xf32, #tpu.memory_space<vmem>>, vector<1x64x1xf32>
    %79 = vector.shape_cast %78 : vector<1x64x1xf32> to vector<64x1xf32>
    %80 = vector.shape_cast %77 : vector<64x1xf32> to vector<1x64x1xf32>
    tpu.vector_store %arg8[%c1_47, %c0_48, %c0_49], %80 {strides = array<i32>} : memref<2x64x1xf32, #tpu.memory_space<vmem>>, vector<1x64x1xf32>,
    %c1_50 = arith.constant 1 : index
    %c0_51 = arith.constant 0 : index
    %c0_52 = arith.constant 0 : index
    %81 = vector.load %arg7[%c1_50, %c0_51, %c0_52] : memref<2x64x1xf32, #tpu.memory_space<vmem>>, vector<1x64x1xf32>
    %82 = vector.shape_cast %81 : vector<1x64x1xf32> to vector<64x1xf32>
    %83 = vector.shape_cast %55 : vector<64x1xf32> to vector<1x64x1xf32>
    tpu.vector_store %arg7[%c1_50, %c0_51, %c0_52], %83 {strides = array<i32>} : memref<2x64x1xf32, #tpu.memory_space<vmem>>, vector<1x64x1xf32>,
    %c0_i32_53 = arith.constant 0 : i32
    %84 = arith.cmpi eq, %arg2, %c0_i32_53 : i32
    %85 = arith.extui %84 : i1 to i32
    %c0_i32_54 = arith.constant 0 : i32
    %86 = arith.cmpi ne, %85, %c0_i32_54 : i32
    scf.if %86 {
      %c0_55 = arith.constant 0 : index
      %c0_56 = arith.constant 0 : index
      %c0_57 = arith.constant 0 : index
      %87 = vector.load %arg8[%c0_55, %c0_56, %c0_57] : memref<2x64x1xf32, #tpu.memory_space<vmem>>, vector<1x64x1xf32>
      %88 = vector.shape_cast %87 : vector<1x64x1xf32> to vector<64x1xf32>
      %89 = tpu.reciprocal %88 : vector<64x1xf32> -> vector<64x1xf32>
      %c0_58 = arith.constant 0 : index
      %c0_59 = arith.constant 0 : index
      %c0_60 = arith.constant 0 : index
      %90 = vector.load %arg9[%c0_58, %c0_59, %c0_60] : memref<2x64x32xf32, #tpu.memory_space<vmem>>, vector<1x64x32xf32>
      %91 = vector.shape_cast %90 : vector<1x64x32xf32> to vector<64x32xf32>
      %92 = vector.broadcast %89 : vector<64x1xf32> to vector<64x32xf32>
      %93 = arith.mulf %91, %92 : vector<64x32xf32>
      %c1_61 = arith.constant 1 : index
      %c0_62 = arith.constant 0 : index
      %c0_63 = arith.constant 0 : index
      %94 = vector.load %arg8[%c1_61, %c0_62, %c0_63] : memref<2x64x1xf32, #tpu.memory_space<vmem>>, vector<1x64x1xf32>
      %95 = vector.shape_cast %94 : vector<1x64x1xf32> to vector<64x1xf32>
      %96 = tpu.reciprocal %95 : vector<64x1xf32> -> vector<64x1xf32>
      %c1_64 = arith.constant 1 : index
      %c0_65 = arith.constant 0 : index
      %c0_66 = arith.constant 0 : index
      %97 = vector.load %arg9[%c1_64, %c0_65, %c0_66] : memref<2x64x32xf32, #tpu.memory_space<vmem>>, vector<1x64x32xf32>
      %98 = vector.shape_cast %97 : vector<1x64x32xf32> to vector<64x32xf32>
      %99 = vector.broadcast %96 : vector<64x1xf32> to vector<64x32xf32>
      %100 = arith.mulf %98, %99 : vector<64x32xf32>
      %101 = tpu.concatenate %93, %100 in 1 : vector<64x32xf32>, vector<64x32xf32> -> vector<64x64xf32>
      %c0_67 = arith.constant 0 : index
      %c0_68 = arith.constant 0 : index
      %c0_69 = arith.constant 0 : index
      %102 = vector.load %arg6[%c0_67, %c0_68, %c0_69] : memref<1x64x64xf32, #tpu.memory_space<vmem>>, vector<1x64x64xf32>
      %103 = vector.shape_cast %102 : vector<1x64x64xf32> to vector<64x64xf32>
      %104 = vector.shape_cast %101 : vector<64x64xf32> to vector<1x64x64xf32>
      tpu.vector_store %arg6[%c0_67, %c0_68, %c0_69], %104 {strides = array<i32>} : memref<1x64x64xf32, #tpu.memory_space<vmem>>, vector<1x64x64xf32>,
    } else {
    }
    return
  }
  func.func @transform_0(%arg0: i32, %arg1: i32, %arg2: i32) -> (i32, i32, i32) {
    %c0_i32 = arith.constant 0 : i32
    %c0_i32_0 = arith.constant 0 : i32
    return %arg0, %arg1, %c0_i32 : i32, i32, i32
  }
  func.func @transform_1(%arg0: i32, %arg1: i32, %arg2: i32) -> (i32, i32, i32) {
    %c0_i32 = arith.constant 0 : i32
    %c0_i32_0 = arith.constant 0 : i32
    return %arg0, %arg2, %c0_i32 : i32, i32, i32
  }
  func.func @transform_2(%arg0: i32, %arg1: i32, %arg2: i32) -> (i32, i32, i32) {
    %c0_i32 = arith.constant 0 : i32
    %c0_i32_0 = arith.constant 0 : i32
    return %arg0, %arg2, %c0_i32 : i32, i32, i32
  }
  func.func @transform_3(%arg0: i32, %arg1: i32, %arg2: i32) -> (i32, i32, i32) {
    %c0_i32 = arith.constant 0 : i32
    %c0_i32_0 = arith.constant 0 : i32
    return %arg0, %arg1, %c0_i32 : i32, i32, i32
  }
}

</mosaic_0001>

<llo_original>
// kernel: tpu_custom_call.1
$region0: #{tpu_custom_call.1}
  #allocation0 [shape = 'u32[]', space=smem, size = 0x4, offset = 0x4, fixed_abs, tag = 'smem constant byte address 0x4 - core index']
  #allocation1 [shape = 'u32[144,128]{1,0:T(1,128)}', space=vmem, size = 0x12000, scoped, tag = 'internal scratch']
  #allocation2 [shape = 'f32[2,64,1]{2,1,0:T(8,128)}', space=vmem, size = 0x10000, scoped, tag = 'scratch operand']
  #allocation3 [shape = 'f32[2,64,1]{2,1,0:T(8,128)}', space=vmem, size = 0x10000, scoped, tag = 'scratch operand']
  #allocation4 [shape = 'f32[2,64,32]{2,1,0:T(8,128)}', space=vmem, size = 0x10000, scoped, tag = 'scratch operand']
  #allocation5 [shape = 'bf16[2,64,32]{2,1,0:T(16,128)(2,1)}', space=vmem, size = 0x8000, scoped, tag = 'scratch operand']
  %s0 = inlined_call_operand.hbm [shape: bf16[2,64,64], index: 0, kind: input, shape index: {}]
  %s1 = inlined_call_operand.hbm [shape: bf16[2,64,64], index: 1, kind: input, shape index: {}]
  %s2 = inlined_call_operand.hbm [shape: bf16[2,64,64], index: 2, kind: input, shape index: {}]
  %s3 = inlined_call_operand.hbm [shape: f32[2,64,64], index: 3, kind: output, shape index: {}]
  %s4 = sld [smem:[#allocation0]]
  $region65: #{tpu_custom_call.1} parent=0
    _
  %s6 = ssub.s32 1, %s4
  %s7 = scalar_select 0, %s6, %s4
  $region1: #{tpu_custom_call.1} parent=0
    #allocation6 [shape = 'u8[32768]{0}', space=vmem, size = 0x8000, scoped, tag = 'input window, operand 0']
    #allocation7 [shape = 's32[2]{0}', space=sflag, size = 0x8, scoped, tag = 'scoped memory for tpu_custom_call.1']
    #allocation8 [shape = 's32[2]{0}', space=sflag, size = 0x8, scoped, tag = 'scoped memory for tpu_custom_call.1']
    #allocation9 [shape = 'u8[32768]{0}', space=vmem, size = 0x8000, scoped, tag = 'input window, operand 1']
    #allocation10 [shape = 's32[2]{0}', space=sflag, size = 0x8, scoped, tag = 'scoped memory for tpu_custom_call.1']
    #allocation11 [shape = 'u8[32768]{0}', space=vmem, size = 0x8000, scoped, tag = 'input window, operand 2']
    #allocation12 [shape = 'u8[65536]{0}', space=vmem, size = 0x10000, scoped, tag = 'output window, operand 0']
    %8 = vsyncpa [#allocation7], 0
    %s9 = scalar_lea.sflag [#allocation7], 1
    %10 = vsyncpa %s9, 0
    %11 = vsyncpa [#allocation10], 0
    %s12 = scalar_lea.sflag [#allocation10], 1
    %13 = vsyncpa %s12, 0
    %14 = vsyncpa [#allocation8], 0
    %s15 = scalar_lea.sflag [#allocation8], 1
    %16 = vsyncpa %s15, 0
    loop: start=0, step=1, limit=4
    $region2: #{tpu_custom_call.1} parent=1 // loop_pre_header
      _
    $region3: #{tpu_custom_call.1} parent=1 // loop_header
      %s18 = sphi 0, %s22
      %p19 = scmp.ge.s32.totalorder %s18, 4
      %s25 = sphi 0, %s44
      %s26 = sphi 0, %s40
      %s27 = sphi 0, %s36
      %s28 = sphi 0, %s25
      %s29 = sphi 0, %s26
      %s30 = sphi 0, %s27
      %s31 = sphi 0, %s28
      %s32 = sphi 0, %s29
      %s33 = sphi 0, %s30
      %s49 = sphi 0, %s51
      %s52 = sphi 0, %s49
      %s53 = sphi 0, %s52
      %s69 = sphi 0, %s53
      %s77 = sphi 0, %s79
      %s80 = sphi 0, %s77
      %s81 = sphi 0, %s80
      %s97 = sphi 0, %s81
      %s105 = sphi 0, %s107
      %s108 = sphi 0, %s105
      %s109 = sphi 0, %s108
      %s125 = sphi 0, %s109
      %s133 = sphi 0, %s135
      %s136 = sphi 0, %s133
      %s137 = sphi 0, %s136
      %s153 = sphi 0, %s137
    $region4: #{tpu_custom_call.1} parent=1 // loop_header_branch
      %21 = sbr.rel (%p19) target = $region8
    $region5: #{tpu_custom_call.1} parent=1 // loop_body
      %s23 = ssub.s32 %s18, 1
      %s24 = ssub.s32 %s18, 2
      %s34 = sadd.s32 1, %s27
      %p35 = scmp.ge.s32.totalorder %s34, 1
      %s36 = scalar_select %p35, 0, %s34
      %s37 = sadd.s32 1, %s26
      %s38 = scalar_select %p35, %s37, %s26
      %p39 = scmp.ge.s32.totalorder %s38, 1
      %s40 = scalar_select %p39, 0, %s38
      %s41 = sadd.s32 1, %s25
      %s42 = scalar_select %p39, %s41, %s25
      %p43 = scmp.ge.s32.totalorder %s42, 2
      %s44 = scalar_select %p43, 0, %s42
      %s45 = ssub.s32 %s25, %s44
      %s46 = ssub.s32 %s26, %s40
      %s47 = sor.u32 %s45, %s46
      %p48 = scmp.eq.s32.totalorder %s47, 0
      %s50 = sadd.s32 %s49, 1
      %s51 = scalar_select %p48, %s49, %s50
      %p54 = pneg %p48
      %p55 = scmp.eq.s32.totalorder %s18, 1
      %p56 = por %p54, %p55
      %p57 = scmp.ne.s32.totalorder %s49, %s52
      %p58 = scmp.eq.s32.totalorder %s18, 0
      %p59 = por %p57, %p58
      %p60 = scmp.ne.s32.totalorder %s49, %s52
      %p61 = scmp.eq.s32.totalorder %s23, 1
      %p62 = por %p60, %p61
      %p63 = scmp.ne.s32.totalorder %s52, %s53
      %p64 = scmp.eq.s32.totalorder %s23, 0
      %p65 = por %p63, %p64
      %p66 = scmp.ne.s32.totalorder %s52, %s53
      %p67 = scmp.eq.s32.totalorder %s24, 1
      %p68 = por %p66, %p67
      %p70 = scmp.ne.s32.totalorder %s53, %s69
      %p71 = scmp.eq.s32.totalorder %s24, 0
      %p72 = por %p70, %p71
      %s73 = ssub.s32 %s25, %s44
      %s74 = ssub.s32 %s27, %s36
      %s75 = sor.u32 %s73, %s74
      %p76 = scmp.eq.s32.totalorder %s75, 0
      %s78 = sadd.s32 %s77, 1
      %s79 = scalar_select %p76, %s77, %s78
      %p82 = pneg %p76
      %p83 = scmp.eq.s32.totalorder %s18, 1
      %p84 = por %p82, %p83
      %p85 = scmp.ne.s32.totalorder %s77, %s80
      %p86 = scmp.eq.s32.totalorder %s18, 0
      %p87 = por %p85, %p86
      %p88 = scmp.ne.s32.totalorder %s77, %s80
      %p89 = scmp.eq.s32.totalorder %s23, 1
      %p90 = por %p88, %p89
      %p91 = scmp.ne.s32.totalorder %s80, %s81
      %p92 = scmp.eq.s32.totalorder %s23, 0
      %p93 = por %p91, %p92
      %p94 = scmp.ne.s32.totalorder %s80, %s81
      %p95 = scmp.eq.s32.totalorder %s24, 1
      %p96 = por %p94, %p95
      %p98 = scmp.ne.s32.totalorder %s81, %s97
      %p99 = scmp.eq.s32.totalorder %s24, 0
      %p100 = por %p98, %p99
      %s101 = ssub.s32 %s25, %s44
      %s102 = ssub.s32 %s27, %s36
      %s103 = sor.u32 %s101, %s102
      %p104 = scmp.eq.s32.totalorder %s103, 0
      %s106 = sadd.s32 %s105, 1
      %s107 = scalar_select %p104, %s105, %s106
      %p110 = pneg %p104
      %p111 = scmp.eq.s32.totalorder %s18, 1
      %p112 = por %p110, %p111
      %p113 = scmp.ne.s32.totalorder %s105, %s108
      %p114 = scmp.eq.s32.totalorder %s18, 0
      %p115 = por %p113, %p114
      %p116 = scmp.ne.s32.totalorder %s105, %s108
      %p117 = scmp.eq.s32.totalorder %s23, 1
      %p118 = por %p116, %p117
      %p119 = scmp.ne.s32.totalorder %s108, %s109
      %p120 = scmp.eq.s32.totalorder %s23, 0
      %p121 = por %p119, %p120
      %p122 = scmp.ne.s32.totalorder %s108, %s109
      %p123 = scmp.eq.s32.totalorder %s24, 1
      %p124 = por %p122, %p123
      %p126 = scmp.ne.s32.totalorder %s109, %s125
      %p127 = scmp.eq.s32.totalorder %s24, 0
      %p128 = por %p126, %p127
      %s129 = ssub.s32 %s25, %s44
      %s130 = ssub.s32 %s26, %s40
      %s131 = sor.u32 %s129, %s130
      %p132 = scmp.eq.s32.totalorder %s131, 0
      %s134 = sadd.s32 %s133, 1
      %s135 = scalar_select %p132, %s133, %s134
      %p138 = pneg %p132
      %p139 = scmp.eq.s32.totalorder %s18, 1
      %p140 = por %p138, %p139
      %p141 = scmp.ne.s32.totalorder %s133, %s136
      %p142 = scmp.eq.s32.totalorder %s18, 0
      %p143 = por %p141, %p142
      %p144 = scmp.ne.s32.totalorder %s133, %s136
      %p145 = scmp.eq.s32.totalorder %s23, 1
      %p146 = por %p144, %p145
      %p147 = scmp.ne.s32.totalorder %s136, %s137
      %p148 = scmp.eq.s32.totalorder %s23, 0
      %p149 = por %p147, %p148
      %p150 = scmp.ne.s32.totalorder %s136, %s137
      %p151 = scmp.eq.s32.totalorder %s24, 1
      %p152 = por %p150, %p151
      %p154 = scmp.ne.s32.totalorder %s137, %s153
      %p155 = scmp.eq.s32.totalorder %s24, 0
      %p156 = por %p154, %p155
      %p157 = scmp.le.s32.totalorder 1, %s18
      %p158 = scmp.lt.s32.totalorder %s18, 3
      %p159 = pnand %p157, %p158
      %p160 = pneg %p159
      // Predicated region
      $region9: #{tpu_custom_call.1} parent=5 // pred_check
        _
      $region10: #{tpu_custom_call.1} parent=5 // pred_check_branch
        %162 = sbr.rel (%p159) target = $region12
      $region11: #{tpu_custom_call.1} parent=5 // pred_region
        %s163 = ssub.s32 %s18, 1
      $region12: #{tpu_custom_call.1} parent=5 // pred_fallthru
        _
      %p164 = scmp.lt.s32.totalorder %s18, 2
      // Predicated region
      $region13: #{tpu_custom_call.1} parent=5 // pred_check
        %p165 = pneg %p164
      $region14: #{tpu_custom_call.1} parent=5 // pred_check_branch
        %167 = sbr.rel (%p165) target = $region16
      $region15: #{tpu_custom_call.1} parent=5 // pred_region
        // Predicated region
        $region17: #{tpu_custom_call.1} parent=15 // pred_check
          %p168 = pneg %p59
        $region18: #{tpu_custom_call.1} parent=15 // pred_check_branch
          %170 = sbr.rel (%p168) target = $region20
        $region19: #{tpu_custom_call.1} parent=15 // pred_region
          %s171 = sand.u32 %s49, 1
          %s172 = scalar_lea.sflag [#allocation7], %s171
          %s173 = sand.u32 %s49, 1
          %s174 = smul.addr %s173, 32
          %s175 = scalar_lea.vmem [#allocation6], %s174
          %s176 = smul.u32 8, %s26
          %s178 = ssub.s32 512, 512
          %179 = vsyncadd %s172, %s178
          %s180 = smul.addr %s25, 8
          %s181 = sadd.s32 %s176, %s180
          %s182 = smul.addr %s181, 64
          %s183 = scalar_lea.hbm %s0, %s182
          %s184 = sshll.u32 %s175, 4
          %s185 = int_to_ptr.vmem [resolvable:$true] %s184
          %190 = dma.hbm_to_vmem [thread:$0]  %s183, 512, %s185, %s172, 64, 64, 4
        $region20: #{tpu_custom_call.1} parent=15 // pred_fallthru
          _
        // Predicated region
        $region21: #{tpu_custom_call.1} parent=15 // pred_check
          %p191 = pneg %p87
        $region22: #{tpu_custom_call.1} parent=15 // pred_check_branch
          %193 = sbr.rel (%p191) target = $region24
        $region23: #{tpu_custom_call.1} parent=15 // pred_region
          %s194 = sand.u32 %s18, 1
          %s195 = scalar_lea.sflag [#allocation10], %s194
          %s196 = sand.u32 %s77, 1
          %s197 = smul.addr %s196, 32
          %s198 = scalar_lea.vmem [#allocation9], %s197
          %s199 = smul.u32 8, %s27
          %s201 = ssub.s32 512, 512
          %202 = vsyncadd %s195, %s201
          %s203 = smul.addr %s25, 8
          %s204 = sadd.s32 %s199, %s203
          %s205 = smul.addr %s204, 64
          %s206 = scalar_lea.hbm %s1, %s205
          %s207 = sshll.u32 %s198, 4
          %s208 = int_to_ptr.vmem [resolvable:$true] %s207
          %213 = dma.hbm_to_vmem [thread:$0]  %s206, 512, %s208, %s195, 64, 64, 4
        $region24: #{tpu_custom_call.1} parent=15 // pred_fallthru
          _
        // Predicated region
        $region25: #{tpu_custom_call.1} parent=15 // pred_check
          %p214 = pneg %p115
        $region26: #{tpu_custom_call.1} parent=15 // pred_check_branch
          %216 = sbr.rel (%p214) target = $region28
        $region27: #{tpu_custom_call.1} parent=15 // pred_region
          %s217 = sand.u32 %s18, 1
          %s218 = scalar_lea.sflag [#allocation10], %s217
          %s219 = sand.u32 %s105, 1
          %s220 = smul.addr %s219, 32
          %s221 = scalar_lea.vmem [#allocation11], %s220
          %s222 = smul.u32 8, %s27
          %s224 = ssub.s32 512, 512
          %225 = vsyncadd %s218, %s224
          %s226 = smul.addr %s25, 8
          %s227 = sadd.s32 %s222, %s226
          %s228 = smul.addr %s227, 64
          %s229 = scalar_lea.hbm %s2, %s228
          %s230 = sshll.u32 %s221, 4
          %s231 = int_to_ptr.vmem [resolvable:$true] %s230
          %236 = dma.hbm_to_vmem [thread:$0]  %s229, 512, %s231, %s218, 64, 64, 4
        $region28: #{tpu_custom_call.1} parent=15 // pred_fallthru
          _
      $region16: #{tpu_custom_call.1} parent=5 // pred_fallthru
        _
      %p237 = scmp.le.s32.totalorder 1, %s18
      %p238 = scmp.lt.s32.totalorder %s18, 3
      %p239 = pnand %p237, %p238
      %p240 = pneg %p239
      // Predicated region
      $region29: #{tpu_custom_call.1} parent=5 // pred_check
        _
      $region30: #{tpu_custom_call.1} parent=5 // pred_check_branch
        %242 = sbr.rel (%p239) target = $region32
      $region31: #{tpu_custom_call.1} parent=5 // pred_region
        %s243 = ssub.s32 %s18, 1
        %s244 = sand.u32 %s52, 1
        %s245 = scalar_lea.sflag [#allocation7], %s244
        %s246 = sand.u32 %s52, 1
        %s247 = smul.addr %s246, 32
        %s248 = scalar_lea.vmem [#allocation6], %s247
        // Predicated region
        $region33: #{tpu_custom_call.1} parent=31 // pred_check
          %p249 = pneg %p65
        $region34: #{tpu_custom_call.1} parent=31 // pred_check_branch
          %251 = sbr.rel (%p249) target = $region36
        $region35: #{tpu_custom_call.1} parent=31 // pred_region
          %252 = dma.done %s245, 512
        $region36: #{tpu_custom_call.1} parent=31 // pred_fallthru
          _
        %s253 = sand.u32 %s23, 1
        %s254 = scalar_lea.sflag [#allocation10], %s253
        %s255 = sand.u32 %s80, 1
        %s256 = smul.addr %s255, 32
        %s257 = scalar_lea.vmem [#allocation9], %s256
        // Predicated region
        $region37: #{tpu_custom_call.1} parent=31 // pred_check
          %p258 = pneg %p93
        $region38: #{tpu_custom_call.1} parent=31 // pred_check_branch
          %260 = sbr.rel (%p258) target = $region40
        $region39: #{tpu_custom_call.1} parent=31 // pred_region
          %261 = dma.done %s254, 512
        $region40: #{tpu_custom_call.1} parent=31 // pred_fallthru
          _
        %s262 = sand.u32 %s23, 1
        %s263 = scalar_lea.sflag [#allocation10], %s262
        %s264 = sand.u32 %s108, 1
        %s265 = smul.addr %s264, 32
        %s266 = scalar_lea.vmem [#allocation11], %s265
        // Predicated region
        $region41: #{tpu_custom_call.1} parent=31 // pred_check
          %p267 = pneg %p121
        $region42: #{tpu_custom_call.1} parent=31 // pred_check_branch
          %269 = sbr.rel (%p267) target = $region44
        $region43: #{tpu_custom_call.1} parent=31 // pred_region
          %270 = dma.done %s263, 512
        $region44: #{tpu_custom_call.1} parent=31 // pred_fallthru
          _
        %s271 = sand.u32 %s52, 1
        %s272 = scalar_lea.sflag [#allocation7], %s271
        %s273 = sand.u32 %s52, 1
        %s274 = smul.addr %s273, 32
        %s275 = scalar_lea.vmem [#allocation6], %s274
        %p276 = pneg %p65
        %p277 = pneg %p62
        %s278 = sand.u32 %s23, 1
        %s279 = scalar_lea.sflag [#allocation10], %s278
        %s280 = sand.u32 %s80, 1
        %s281 = smul.addr %s280, 32
        %s282 = scalar_lea.vmem [#allocation9], %s281
        %p283 = pneg %p93
        %p284 = pneg %p90
        %s285 = sand.u32 %s23, 1
        %s286 = scalar_lea.sflag [#allocation10], %s285
        %s287 = sand.u32 %s108, 1
        %s288 = smul.addr %s287, 32
        %s289 = scalar_lea.vmem [#allocation11], %s288
        %p290 = pneg %p121
        %p291 = pneg %p118
        %p292 = pneg %p149
        %p293 = pneg %p146
        %s294 = sand.u32 %s136, 1
        %s295 = scalar_lea.sflag [#allocation8], %s294
        %s296 = sand.u32 %s136, 1
        %s297 = smul.addr %s296, 64
        %s298 = scalar_lea.vmem [#allocation12], %s297
        %s299 = smul.u32 8, %s29
        %s300 = smul.u32 8, %s30
        %s301 = smul.u32 8, %s30
        %s302 = smul.u32 8, %s29
        %p305 = scmp.eq.s32.totalorder %s30, 0
        // Predicated region
        $region45: #{tpu_custom_call.1} parent=31 // pred_check
          %p306 = pneg %p305
        $region46: #{tpu_custom_call.1} parent=31 // pred_check_branch
          %308 = sbr.rel (%p306) target = $region48
        $region47: #{tpu_custom_call.1} parent=31 // pred_region
          %vm309 = vcmask 7168
          %310 = vst.msk [vmem:[#allocation2] sm:$0xff] %vm309, -inf
          %311 = vst.msk [vmem:[#allocation2 + $0x8] sm:$0xff] %vm309, -inf
          %312 = vst.msk [vmem:[#allocation2 + $0x10] sm:$0xff] %vm309, -inf
          %313 = vst.msk [vmem:[#allocation2 + $0x18] sm:$0xff] %vm309, -inf
          %314 = vst.msk [vmem:[#allocation2 + $0x20] sm:$0xff] %vm309, -inf
          %315 = vst.msk [vmem:[#allocation2 + $0x28] sm:$0xff] %vm309, -inf
          %316 = vst.msk [vmem:[#allocation2 + $0x30] sm:$0xff] %vm309, -inf
          %317 = vst.msk [vmem:[#allocation2 + $0x38] sm:$0xff] %vm309, -inf
          %318 = vst.msk [vmem:[#allocation2 + $0x40] sm:$0xff] %vm309, -inf
          %319 = vst.msk [vmem:[#allocation2 + $0x48] sm:$0xff] %vm309, -inf
          %320 = vst.msk [vmem:[#allocation2 + $0x50] sm:$0xff] %vm309, -inf
          %321 = vst.msk [vmem:[#allocation2 + $0x58] sm:$0xff] %vm309, -inf
          %322 = vst.msk [vmem:[#allocation2 + $0x60] sm:$0xff] %vm309, -inf
          %323 = vst.msk [vmem:[#allocation2 + $0x68] sm:$0xff] %vm309, -inf
          %324 = vst.msk [vmem:[#allocation2 + $0x70] sm:$0xff] %vm309, -inf
          %325 = vst.msk [vmem:[#allocation2 + $0x78] sm:$0xff] %vm309, -inf
          %326 = vst.msk [vmem:[#allocation3] sm:$0xff] %vm309, 0.0
          %327 = vst.msk [vmem:[#allocation3 + $0x8] sm:$0xff] %vm309, 0.0
          %328 = vst.msk [vmem:[#allocation3 + $0x10] sm:$0xff] %vm309, 0.0
          %329 = vst.msk [vmem:[#allocation3 + $0x18] sm:$0xff] %vm309, 0.0
          %330 = vst.msk [vmem:[#allocation3 + $0x20] sm:$0xff] %vm309, 0.0
          %331 = vst.msk [vmem:[#allocation3 + $0x28] sm:$0xff] %vm309, 0.0
          %332 = vst.msk [vmem:[#allocation3 + $0x30] sm:$0xff] %vm309, 0.0
          %333 = vst.msk [vmem:[#allocation3 + $0x38] sm:$0xff] %vm309, 0.0
          %334 = vst.msk [vmem:[#allocation3 + $0x40] sm:$0xff] %vm309, 0.0
          %335 = vst.msk [vmem:[#allocation3 + $0x48] sm:$0xff] %vm309, 0.0
          %336 = vst.msk [vmem:[#allocation3 + $0x50] sm:$0xff] %vm309, 0.0
          %337 = vst.msk [vmem:[#allocation3 + $0x58] sm:$0xff] %vm309, 0.0
          %338 = vst.msk [vmem:[#allocation3 + $0x60] sm:$0xff] %vm309, 0.0
          %339 = vst.msk [vmem:[#allocation3 + $0x68] sm:$0xff] %vm309, 0.0
          %340 = vst.msk [vmem:[#allocation3 + $0x70] sm:$0xff] %vm309, 0.0
          %341 = vst.msk [vmem:[#allocation3 + $0x78] sm:$0xff] %vm309, 0.0
          %vm342 = vcmask 261120
          %343 = vst.msk [vmem:[#allocation4] sm:$0xff] %vm342, 0.0
          %344 = vst.msk [vmem:[#allocation4 + $0x8] sm:$0xff] %vm342, 0.0
          %345 = vst.msk [vmem:[#allocation4 + $0x10] sm:$0xff] %vm342, 0.0
          %346 = vst.msk [vmem:[#allocation4 + $0x18] sm:$0xff] %vm342, 0.0
          %347 = vst.msk [vmem:[#allocation4 + $0x20] sm:$0xff] %vm342, 0.0
          %348 = vst.msk [vmem:[#allocation4 + $0x28] sm:$0xff] %vm342, 0.0
          %349 = vst.msk [vmem:[#allocation4 + $0x30] sm:$0xff] %vm342, 0.0
          %350 = vst.msk [vmem:[#allocation4 + $0x38] sm:$0xff] %vm342, 0.0
          %351 = vst.msk [vmem:[#allocation4 + $0x40] sm:$0xff] %vm342, 0.0
          %352 = vst.msk [vmem:[#allocation4 + $0x48] sm:$0xff] %vm342, 0.0
          %353 = vst.msk [vmem:[#allocation4 + $0x50] sm:$0xff] %vm342, 0.0
          %354 = vst.msk [vmem:[#allocation4 + $0x58] sm:$0xff] %vm342, 0.0
          %355 = vst.msk [vmem:[#allocation4 + $0x60] sm:$0xff] %vm342, 0.0
          %356 = vst.msk [vmem:[#allocation4 + $0x68] sm:$0xff] %vm342, 0.0
          %357 = vst.msk [vmem:[#allocation4 + $0x70] sm:$0xff] %vm342, 0.0
          %358 = vst.msk [vmem:[#allocation4 + $0x78] sm:$0xff] %vm342, 0.0
          %v359 = vld [vmem:[%s248] sm:$0xf]
          %v360 = vld [vmem:[%s248 + $0x4] sm:$0xf]
          %v361 = vld [vmem:[%s248 + $0x8] sm:$0xf]
          %v362 = vld [vmem:[%s248 + $0xc] sm:$0xf]
          %v363 = vld [vmem:[%s248 + $0x10] sm:$0xf]
          %v364 = vld [vmem:[%s248 + $0x14] sm:$0xf]
          %v365 = vld [vmem:[%s248 + $0x18] sm:$0xf]
          %v366 = vld [vmem:[%s248 + $0x1c] sm:$0xf]
          %v367 = vunpack.c.l.bf16 %v359
          %v368 = vunpack.c.l.bf16 %v360
          %v369 = vunpack.c.l.bf16 %v361
          %v370 = vunpack.c.l.bf16 %v362
          %v371 = vunpack.c.l.bf16 %v363
          %v372 = vunpack.c.l.bf16 %v364
          %v373 = vunpack.c.l.bf16 %v365
          %v374 = vunpack.c.l.bf16 %v366
          %v375 = vmul.f32 %v367, 0.17677669
          %v376 = vmul.f32 %v368, 0.17677669
          %v377 = vmul.f32 %v369, 0.17677669
          %v378 = vmul.f32 %v370, 0.17677669
          %v379 = vmul.f32 %v371, 0.17677669
          %v380 = vmul.f32 %v372, 0.17677669
          %v381 = vmul.f32 %v373, 0.17677669
          %v382 = vmul.f32 %v374, 0.17677669
          %v383 = vpack.c.bf16 %v376, %v375
          %v384 = vpack.c.bf16 %v378, %v377
          %v385 = vpack.c.bf16 %v380, %v379
          %v386 = vpack.c.bf16 %v382, %v381
          %387 = vst.msk [vmem:[#allocation5] sm:$0xff] %vm342, %v383
          %388 = vst.msk [vmem:[#allocation5 + $0x8] sm:$0xff] %vm342, %v384
          %389 = vst.msk [vmem:[#allocation5 + $0x10] sm:$0xff] %vm342, %v385
          %390 = vst.msk [vmem:[#allocation5 + $0x18] sm:$0xff] %vm342, %v386
          %395 = vrot.lane.b32.xlu0 %v383, 96
          %v396 = vpop.permute.xlu0 %395
          %397 = vrot.lane.b32.xlu0 %v384, 96
          %v398 = vpop.permute.xlu0 %397
          %399 = vrot.lane.b32.xlu0 %v385, 96
          %v400 = vpop.permute.xlu0 %399
          %401 = vrot.lane.b32.xlu0 %v386, 96
          %v402 = vpop.permute.xlu0 %401
          %s407 = scalar_lea.vmem [#allocation5], 32
          %408 = vst.msk [vmem:[%s407] sm:$0xff] %vm342, %v396
          %409 = vst.msk [vmem:[%s407 + $0x8] sm:$0xff] %vm342, %v398
          %410 = vst.msk [vmem:[%s407 + $0x10] sm:$0xff] %vm342, %v400
          %411 = vst.msk [vmem:[%s407 + $0x18] sm:$0xff] %vm342, %v402
        $region48: #{tpu_custom_call.1} parent=31 // pred_fallthru
          _
        %v412 = vld [vmem:[%s257] sm:$0xf]
        %v413 = vld [vmem:[%s257 + $0x4] sm:$0xf]
        %v414 = vld [vmem:[%s257 + $0x8] sm:$0xf]
        %v415 = vld [vmem:[%s257 + $0xc] sm:$0xf]
        %v416 = vld [vmem:[%s257 + $0x10] sm:$0xf]
        %v417 = vld [vmem:[%s257 + $0x14] sm:$0xf]
        %v418 = vld [vmem:[%s257 + $0x18] sm:$0xf]
        %v419 = vld [vmem:[%s257 + $0x1c] sm:$0xf]
        %v420 = vld [vmem:[%s266] sm:$0xf]
        %v421 = vld [vmem:[%s266 + $0x4] sm:$0xf]
        %v422 = vld [vmem:[%s266 + $0x8] sm:$0xf]
        %v423 = vld [vmem:[%s266 + $0xc] sm:$0xf]
        %v424 = vld [vmem:[%s266 + $0x10] sm:$0xf]
        %v425 = vld [vmem:[%s266 + $0x14] sm:$0xf]
        %v426 = vld [vmem:[%s266 + $0x18] sm:$0xf]
        %v427 = vld [vmem:[%s266 + $0x1c] sm:$0xf]
        %v428 = vld [vmem:[#allocation5] sm:$0xff]
        %v429 = vld [vmem:[#allocation5 + $0x8] sm:$0xff]
        %v430 = vld [vmem:[#allocation5 + $0x10] sm:$0xff]
        %v431 = vld [vmem:[#allocation5 + $0x18] sm:$0xff]
        %v440 = vunpack.c.l.b16 %v412
        %v441 = vunpack.c.l.b16 %v413
        %v442 = vunpack.c.l.b16 %v414
        %v443 = vunpack.c.l.b16 %v415
        %v444 = vunpack.c.l.b16 %v416
        %v445 = vunpack.c.l.b16 %v417
        %v446 = vunpack.c.l.b16 %v418
        %v447 = vunpack.c.l.b16 %v419
        %v448 = vpack.c.b16 %v441, %v440
        %v449 = vpack.c.b16 %v443, %v442
        %v450 = vpack.c.b16 %v445, %v444
        %v451 = vpack.c.b16 %v447, %v446
        %vm452 = vcmask 261120
        %v454 = vsel %vm452, %v428, 0
        %v457 = vsel %vm452, %v429, 0
        %v460 = vsel %vm452, %v430, 0
        %v463 = vsel %vm452, %v431, 0
        %v466 = vsel %vm452, %v448, 0
        %v469 = vsel %vm452, %v449, 0
        %v472 = vsel %vm452, %v450, 0
        %v475 = vsel %vm452, %v451, 0
        %477 = vmatprep.subr.bf16.mxu0 0
        %478 = vmatpush1.bf16.xpose.msra.mxu0 %v466
        %479 = vmatprep.subr.bf16.mxu0 0
        %480 = vmatpush1.bf16.xpose.msra.mxu0 %v469
        %481 = vmatprep.subr.bf16.mxu0 0
        %482 = vmatpush1.bf16.xpose.msra.mxu0 %v472
        %483 = vmatprep.subr.bf16.mxu0 0
        %484 = vmatpush1.bf16.xpose.msra.mxu0 %v475
        %485 = vmatprep.subr.bf16.mxu0 0
        %486 = vmatpush1.bf16.xpose.msra.mxu0 0
        %487 = vmatprep.subr.bf16.mxu0 0
        %488 = vmatpush1.bf16.xpose.msra.mxu0 0
        %489 = vmatprep.subr.bf16.mxu0 0
        %490 = vmatpush1.bf16.xpose.msra.mxu0 0
        %491 = vmatprep.subr.bf16.mxu0 0
        %492 = vmatpush1.bf16.xpose.msra.mxu0 0
        %493 = vmatprep.subr.bf16.mxu0 0
        %494 = vmatpush1.bf16.xpose.msra.mxu0 0
        %495 = vmatprep.subr.bf16.mxu0 0
        %496 = vmatpush1.bf16.xpose.msra.mxu0 0
        %497 = vmatprep.subr.bf16.mxu0 0
        %498 = vmatpush1.bf16.xpose.msra.mxu0 0
        %499 = vmatprep.subr.bf16.mxu0 0
        %500 = vmatpush1.bf16.xpose.msra.mxu0 0
        %501 = vmatprep.subr.bf16.mxu0 0
        %502 = vmatpush1.bf16.xpose.msra.mxu0 0
        %503 = vmatprep.subr.bf16.mxu0 0
        %504 = vmatpush1.bf16.xpose.msra.mxu0 0
        %505 = vmatprep.subr.bf16.mxu0 0
        %506 = vmatpush1.bf16.xpose.msra.mxu0 0
        %507 = vmatprep.subr.bf16.mxu0 0
        %508 = vmatpush1.bf16.xpose.msra.mxu0 0
        %509 = vmatprep.mubr.bf16.mxu0 0
        %510 = vmatmul.mubr.bf16.gmra.mrb[0].mxu0 %v454
        %v511 = vpop.f32.mrb[0].mxu0
        %v512 = vadd.f32 0.0, %v511
        %v513 = vpop.f32.mrb[0].mxu0
        %v514 = vpop.f32.mrb[0].mxu0
        %v515 = vadd.f32 0.0, %v514
        %v516 = vpop.f32.mrb[0].mxu0
        %517 = vmatprep.mubr.bf16.mxu0 0
        %518 = vmatmul.mubr.bf16.gmra.mrb[0].mxu0 %v457
        %v519 = vpop.f32.mrb[0].mxu0
        %v520 = vadd.f32 0.0, %v519
        %v521 = vpop.f32.mrb[0].mxu0
        %v522 = vpop.f32.mrb[0].mxu0
        %v523 = vadd.f32 0.0, %v522
        %v524 = vpop.f32.mrb[0].mxu0
        %525 = vmatprep.mubr.bf16.mxu0 0
        %526 = vmatmul.mubr.bf16.gmra.mrb[0].mxu0 %v460
        %v527 = vpop.f32.mrb[0].mxu0
        %v528 = vadd.f32 0.0, %v527
        %v529 = vpop.f32.mrb[0].mxu0
        %v530 = vpop.f32.mrb[0].mxu0
        %v531 = vadd.f32 0.0, %v530
        %v532 = vpop.f32.mrb[0].mxu0
        %533 = vmatprep.mubr.bf16.mxu0 0
        %534 = vmatmul.mubr.bf16.gmra.mrb[0].mxu0 %v463
        %v535 = vpop.f32.mrb[0].mxu0
        %v536 = vadd.f32 0.0, %v535
        %v537 = vpop.f32.mrb[0].mxu0
        %v538 = vpop.f32.mrb[0].mxu0
        %v539 = vadd.f32 0.0, %v538
        %v540 = vpop.f32.mrb[0].mxu0
        %541 = vdwg.mxu0
        %v542 = vld [vmem:[#allocation2] sm:$0xff]
        %v543 = vld [vmem:[#allocation2 + $0x8] sm:$0xff]
        %v544 = vld [vmem:[#allocation2 + $0x10] sm:$0xff]
        %v545 = vld [vmem:[#allocation2 + $0x18] sm:$0xff]
        %v546 = vld [vmem:[#allocation2 + $0x20] sm:$0xff]
        %v547 = vld [vmem:[#allocation2 + $0x28] sm:$0xff]
        %v548 = vld [vmem:[#allocation2 + $0x30] sm:$0xff]
        %v549 = vld [vmem:[#allocation2 + $0x38] sm:$0xff]
        %vm550 = vcmask 523264
        %v551 = vsel %vm550, %v512, -inf
        %552 = vmax.xlane.f32.xlu0 %v551
        %v553 = vpop.xlane.xlu0 %552
        %v554 = vsel %vm550, %v515, -inf
        %555 = vmax.xlane.f32.xlu0 %v554
        %v556 = vpop.xlane.xlu0 %555
        %v557 = vsel %vm550, %v520, -inf
        %558 = vmax.xlane.f32.xlu0 %v557
        %v559 = vpop.xlane.xlu0 %558
        %v560 = vsel %vm550, %v523, -inf
        %561 = vmax.xlane.f32.xlu0 %v560
        %v562 = vpop.xlane.xlu0 %561
        %v563 = vsel %vm550, %v528, -inf
        %564 = vmax.xlane.f32.xlu0 %v563
        %v565 = vpop.xlane.xlu0 %564
        %v566 = vsel %vm550, %v531, -inf
        %567 = vmax.xlane.f32.xlu0 %v566
        %v568 = vpop.xlane.xlu0 %567
        %v569 = vsel %vm550, %v536, -inf
        %570 = vmax.xlane.f32.xlu0 %v569
        %v571 = vpop.xlane.xlu0 %570
        %v572 = vsel %vm550, %v539, -inf
        %573 = vmax.xlane.f32.xlu0 %v572
        %v574 = vpop.xlane.xlu0 %573
        %v575 = vmax.f32 %v542, %v553
        %v576 = vmax.f32 %v543, %v556
        %v577 = vmax.f32 %v544, %v559
        %v578 = vmax.f32 %v545, %v562
        %v579 = vmax.f32 %v546, %v565
        %v580 = vmax.f32 %v547, %v568
        %v581 = vmax.f32 %v548, %v571
        %v582 = vmax.f32 %v549, %v574
        %v583 = vsub.f32 %v542, %v575
        %v584 = vsub.f32 %v543, %v576
        %v585 = vsub.f32 %v544, %v577
        %v586 = vsub.f32 %v545, %v578
        %v587 = vsub.f32 %v546, %v579
        %v588 = vsub.f32 %v547, %v580
        %v589 = vsub.f32 %v548, %v581
        %v590 = vsub.f32 %v549, %v582
        %v591 = vmul.f32 %v583, 1.442695
        %v592 = vpow.pop %v591
        %v593 = vmul.f32 %v584, 1.442695
        %v594 = vpow.pop %v593
        %v595 = vmul.f32 %v585, 1.442695
        %v596 = vpow.pop %v595
        %v597 = vmul.f32 %v586, 1.442695
        %v598 = vpow.pop %v597
        %v599 = vmul.f32 %v587, 1.442695
        %v600 = vpow.pop %v599
        %v601 = vmul.f32 %v588, 1.442695
        %v602 = vpow.pop %v601
        %v603 = vmul.f32 %v589, 1.442695
        %v604 = vpow.pop %v603
        %v605 = vmul.f32 %v590, 1.442695
        %v606 = vpow.pop %v605
        %608 = vset.pattern.permute.xlu0 0
        %609 = vperm.xlu0 %608, %v575
        %v610 = vpop.permute.xlu0 %609
        %613 = vset.pattern.permute.xlu0 0
        %614 = vperm.xlu0 %613, %v576
        %v615 = vpop.permute.xlu0 %614
        %618 = vset.pattern.permute.xlu0 0
        %619 = vperm.xlu0 %618, %v577
        %v620 = vpop.permute.xlu0 %619
        %623 = vset.pattern.permute.xlu0 0
        %624 = vperm.xlu0 %623, %v578
        %v625 = vpop.permute.xlu0 %624
        %628 = vset.pattern.permute.xlu0 0
        %629 = vperm.xlu0 %628, %v579
        %v630 = vpop.permute.xlu0 %629
        %633 = vset.pattern.permute.xlu0 0
        %634 = vperm.xlu0 %633, %v580
        %v635 = vpop.permute.xlu0 %634
        %638 = vset.pattern.permute.xlu0 0
        %639 = vperm.xlu0 %638, %v581
        %v640 = vpop.permute.xlu0 %639
        %643 = vset.pattern.permute.xlu0 0
        %644 = vperm.xlu0 %643, %v582
        %v645 = vpop.permute.xlu0 %644
        %v647 = vsub.f32 %v512, %v610
        %v648 = vsub.f32 %v515, %v615
        %v649 = vsub.f32 %v520, %v620
        %v650 = vsub.f32 %v523, %v625
        %v651 = vsub.f32 %v528, %v630
        %v652 = vsub.f32 %v531, %v635
        %v653 = vsub.f32 %v536, %v640
        %v654 = vsub.f32 %v539, %v645
        %v655 = vmul.f32 %v647, 1.442695
        %v656 = vpow.pop %v655
        %v657 = vmul.f32 %v648, 1.442695
        %v658 = vpow.pop %v657
        %v659 = vmul.f32 %v649, 1.442695
        %v660 = vpow.pop %v659
        %v661 = vmul.f32 %v650, 1.442695
        %v662 = vpow.pop %v661
        %v663 = vmul.f32 %v651, 1.442695
        %v664 = vpow.pop %v663
        %v665 = vmul.f32 %v652, 1.442695
        %v666 = vpow.pop %v665
        %v667 = vmul.f32 %v653, 1.442695
        %v668 = vpow.pop %v667
        %v669 = vmul.f32 %v654, 1.442695
        %v670 = vpow.pop %v669
        %v671 = vpack.c.bf16 %v658, %v656
        %v672 = vpack.c.bf16 %v662, %v660
        %v673 = vpack.c.bf16 %v666, %v664
        %v674 = vpack.c.bf16 %v670, %v668
        %v683 = vunpack.c.l.b16 %v420
        %v684 = vunpack.c.l.b16 %v421
        %v685 = vunpack.c.l.b16 %v422
        %v686 = vunpack.c.l.b16 %v423
        %v687 = vunpack.c.l.b16 %v424
        %v688 = vunpack.c.l.b16 %v425
        %v689 = vunpack.c.l.b16 %v426
        %v690 = vunpack.c.l.b16 %v427
        %v691 = vpack.c.b16 %v684, %v683
        %v692 = vpack.c.b16 %v686, %v685
        %v693 = vpack.c.b16 %v688, %v687
        %v694 = vpack.c.b16 %v690, %v689
        %v697 = vsel %vm452, %v691, 1065369472
        %v700 = vsel %vm452, %v692, 1065369472
        %v703 = vsel %vm452, %v693, 1065369472
        %v706 = vsel %vm452, %v694, 1065369472
        %v709 = vsel %vm550, %v671, 0
        %v712 = vsel %vm550, %v672, 0
        %v715 = vsel %vm550, %v673, 0
        %v718 = vsel %vm550, %v674, 0
        %720 = vmatprep.subr.bf16.mxu0 0
        %721 = vmatpush1.bf16.msra.mxu0 %v697
        %722 = vmatprep.subr.bf16.mxu0 0
        %723 = vmatpush1.bf16.msra.mxu0 %v700
        %724 = vmatprep.subr.bf16.mxu0 0
        %725 = vmatpush1.bf16.msra.mxu0 %v703
        %726 = vmatprep.subr.bf16.mxu0 0
        %727 = vmatpush1.bf16.msra.mxu0 %v706
        %728 = vmatprep.subr.bf16.mxu0 0
        %729 = vmatpush1.bf16.msra.mxu0 0
        %730 = vmatprep.subr.bf16.mxu0 0
        %731 = vmatpush1.bf16.msra.mxu0 0
        %732 = vmatprep.subr.bf16.mxu0 0
        %733 = vmatpush1.bf16.msra.mxu0 0
        %734 = vmatprep.subr.bf16.mxu0 0
        %735 = vmatpush1.bf16.msra.mxu0 0
        %736 = vmatprep.subr.bf16.mxu0 0
        %737 = vmatpush1.bf16.msra.mxu0 0
        %738 = vmatprep.subr.bf16.mxu0 0
        %739 = vmatpush1.bf16.msra.mxu0 0
        %740 = vmatprep.subr.bf16.mxu0 0
        %741 = vmatpush1.bf16.msra.mxu0 0
        %742 = vmatprep.subr.bf16.mxu0 0
        %743 = vmatpush1.bf16.msra.mxu0 0
        %744 = vmatprep.subr.bf16.mxu0 0
        %745 = vmatpush1.bf16.msra.mxu0 0
        %746 = vmatprep.subr.bf16.mxu0 0
        %747 = vmatpush1.bf16.msra.mxu0 0
        %748 = vmatprep.subr.bf16.mxu0 0
        %749 = vmatpush1.bf16.msra.mxu0 0
        %750 = vmatprep.subr.bf16.mxu0 0
        %751 = vmatpush1.bf16.msra.mxu0 0
        %752 = vmatprep.mubr.bf16.mxu0 0
        %753 = vmatmul.mubr.bf16.gmra.mrb[0].mxu0 %v709
        %v754 = vpop.f32.mrb[0].mxu0
        %v755 = vadd.f32 0.0, %v754
        %v756 = vpop.f32.mrb[0].mxu0
        %v757 = vpop.f32.mrb[0].mxu0
        %v758 = vadd.f32 0.0, %v757
        %v759 = vpop.f32.mrb[0].mxu0
        %760 = vmatprep.mubr.bf16.mxu0 0
        %761 = vmatmul.mubr.bf16.gmra.mrb[0].mxu0 %v712
        %v762 = vpop.f32.mrb[0].mxu0
        %v763 = vadd.f32 0.0, %v762
        %v764 = vpop.f32.mrb[0].mxu0
        %v765 = vpop.f32.mrb[0].mxu0
        %v766 = vadd.f32 0.0, %v765
        %v767 = vpop.f32.mrb[0].mxu0
        %768 = vmatprep.mubr.bf16.mxu0 0
        %769 = vmatmul.mubr.bf16.gmra.mrb[0].mxu0 %v715
        %v770 = vpop.f32.mrb[0].mxu0
        %v771 = vadd.f32 0.0, %v770
        %v772 = vpop.f32.mrb[0].mxu0
        %v773 = vpop.f32.mrb[0].mxu0
        %v774 = vadd.f32 0.0, %v773
        %v775 = vpop.f32.mrb[0].mxu0
        %776 = vmatprep.mubr.bf16.mxu0 0
        %777 = vmatmul.mubr.bf16.gmra.mrb[0].mxu0 %v718
        %v778 = vpop.f32.mrb[0].mxu0
        %v779 = vadd.f32 0.0, %v778
        %v780 = vpop.f32.mrb[0].mxu0
        %v781 = vpop.f32.mrb[0].mxu0
        %v782 = vadd.f32 0.0, %v781
        %v783 = vpop.f32.mrb[0].mxu0
        %784 = vdwg.mxu0
        %v785 = vld [vmem:[#allocation4] sm:$0xff]
        %v786 = vld [vmem:[#allocation4 + $0x8] sm:$0xff]
        %v787 = vld [vmem:[#allocation4 + $0x10] sm:$0xff]
        %v788 = vld [vmem:[#allocation4 + $0x18] sm:$0xff]
        %v789 = vld [vmem:[#allocation4 + $0x20] sm:$0xff]
        %v790 = vld [vmem:[#allocation4 + $0x28] sm:$0xff]
        %v791 = vld [vmem:[#allocation4 + $0x30] sm:$0xff]
        %v792 = vld [vmem:[#allocation4 + $0x38] sm:$0xff]
        %794 = vset.pattern.permute.xlu0 0
        %795 = vperm.xlu0 %794, %v592
        %v796 = vpop.permute.xlu0 %795
        %799 = vset.pattern.permute.xlu0 0
        %800 = vperm.xlu0 %799, %v594
        %v801 = vpop.permute.xlu0 %800
        %804 = vset.pattern.permute.xlu0 0
        %805 = vperm.xlu0 %804, %v596
        %v806 = vpop.permute.xlu0 %805
        %809 = vset.pattern.permute.xlu0 0
        %810 = vperm.xlu0 %809, %v598
        %v811 = vpop.permute.xlu0 %810
        %814 = vset.pattern.permute.xlu0 0
        %815 = vperm.xlu0 %814, %v600
        %v816 = vpop.permute.xlu0 %815
        %819 = vset.pattern.permute.xlu0 0
        %820 = vperm.xlu0 %819, %v602
        %v821 = vpop.permute.xlu0 %820
        %824 = vset.pattern.permute.xlu0 0
        %825 = vperm.xlu0 %824, %v604
        %v826 = vpop.permute.xlu0 %825
        %829 = vset.pattern.permute.xlu0 0
        %830 = vperm.xlu0 %829, %v606
        %v831 = vpop.permute.xlu0 %830
        %v833 = vmul.f32 %v796, %v785
        %v834 = vmul.f32 %v801, %v786
        %v835 = vmul.f32 %v806, %v787
        %v836 = vmul.f32 %v811, %v788
        %v837 = vmul.f32 %v816, %v789
        %v838 = vmul.f32 %v821, %v790
        %v839 = vmul.f32 %v826, %v791
        %v840 = vmul.f32 %v831, %v792
        %v841 = vadd.f32 %v833, %v755
        %v842 = vadd.f32 %v834, %v758
        %v843 = vadd.f32 %v835, %v763
        %v844 = vadd.f32 %v836, %v766
        %v845 = vadd.f32 %v837, %v771
        %v846 = vadd.f32 %v838, %v774
        %v847 = vadd.f32 %v839, %v779
        %v848 = vadd.f32 %v840, %v782
        %849 = vst.msk [vmem:[#allocation4] sm:$0xff] %vm452, %v841
        %850 = vst.msk [vmem:[#allocation4 + $0x8] sm:$0xff] %vm452, %v842
        %851 = vst.msk [vmem:[#allocation4 + $0x10] sm:$0xff] %vm452, %v843
        %852 = vst.msk [vmem:[#allocation4 + $0x18] sm:$0xff] %vm452, %v844
        %853 = vst.msk [vmem:[#allocation4 + $0x20] sm:$0xff] %vm452, %v845
        %854 = vst.msk [vmem:[#allocation4 + $0x28] sm:$0xff] %vm452, %v846
        %855 = vst.msk [vmem:[#allocation4 + $0x30] sm:$0xff] %vm452, %v847
        %856 = vst.msk [vmem:[#allocation4 + $0x38] sm:$0xff] %vm452, %v848
        %v857 = vld [vmem:[#allocation3] sm:$0xff]
        %v858 = vld [vmem:[#allocation3 + $0x8] sm:$0xff]
        %v859 = vld [vmem:[#allocation3 + $0x10] sm:$0xff]
        %v860 = vld [vmem:[#allocation3 + $0x18] sm:$0xff]
        %v861 = vld [vmem:[#allocation3 + $0x20] sm:$0xff]
        %v862 = vld [vmem:[#allocation3 + $0x28] sm:$0xff]
        %v863 = vld [vmem:[#allocation3 + $0x30] sm:$0xff]
        %v864 = vld [vmem:[#allocation3 + $0x38] sm:$0xff]
        %v865 = vmul.f32 %v592, %v857
        %v866 = vmul.f32 %v594, %v858
        %v867 = vmul.f32 %v596, %v859
        %v868 = vmul.f32 %v598, %v860
        %v869 = vmul.f32 %v600, %v861
        %v870 = vmul.f32 %v602, %v862
        %v871 = vmul.f32 %v604, %v863
        %v872 = vmul.f32 %v606, %v864
        %881 = vrot.lane.b32.xlu0 %v755, 96
        %v882 = vpop.permute.xlu0 %881
        %883 = vrot.lane.b32.xlu0 %v758, 96
        %v884 = vpop.permute.xlu0 %883
        %885 = vrot.lane.b32.xlu0 %v763, 96
        %v886 = vpop.permute.xlu0 %885
        %887 = vrot.lane.b32.xlu0 %v766, 96
        %v888 = vpop.permute.xlu0 %887
        %889 = vrot.lane.b32.xlu0 %v771, 96
        %v890 = vpop.permute.xlu0 %889
        %891 = vrot.lane.b32.xlu0 %v774, 96
        %v892 = vpop.permute.xlu0 %891
        %893 = vrot.lane.b32.xlu0 %v779, 96
        %v894 = vpop.permute.xlu0 %893
        %895 = vrot.lane.b32.xlu0 %v782, 96
        %v896 = vpop.permute.xlu0 %895
        %v905 = vadd.f32 %v865, %v882
        %v906 = vadd.f32 %v866, %v884
        %v907 = vadd.f32 %v867, %v886
        %v908 = vadd.f32 %v868, %v888
        %v909 = vadd.f32 %v869, %v890
        %v910 = vadd.f32 %v870, %v892
        %v911 = vadd.f32 %v871, %v894
        %v912 = vadd.f32 %v872, %v896
        %vm913 = vcmask 7168
        %914 = vst.msk [vmem:[#allocation3] sm:$0xff] %vm913, %v905
        %915 = vst.msk [vmem:[#allocation3 + $0x8] sm:$0xff] %vm913, %v906
        %916 = vst.msk [vmem:[#allocation3 + $0x10] sm:$0xff] %vm913, %v907
        %917 = vst.msk [vmem:[#allocation3 + $0x18] sm:$0xff] %vm913, %v908
        %918 = vst.msk [vmem:[#allocation3 + $0x20] sm:$0xff] %vm913, %v909
        %919 = vst.msk [vmem:[#allocation3 + $0x28] sm:$0xff] %vm913, %v910
        %920 = vst.msk [vmem:[#allocation3 + $0x30] sm:$0xff] %vm913, %v911
        %921 = vst.msk [vmem:[#allocation3 + $0x38] sm:$0xff] %vm913, %v912
        %922 = vst.msk [vmem:[#allocation2] sm:$0xff] %vm913, %v575
        %923 = vst.msk [vmem:[#allocation2 + $0x8] sm:$0xff] %vm913, %v576
        %924 = vst.msk [vmem:[#allocation2 + $0x10] sm:$0xff] %vm913, %v577
        %925 = vst.msk [vmem:[#allocation2 + $0x18] sm:$0xff] %vm913, %v578
        %926 = vst.msk [vmem:[#allocation2 + $0x20] sm:$0xff] %vm913, %v579
        %927 = vst.msk [vmem:[#allocation2 + $0x28] sm:$0xff] %vm913, %v580
        %928 = vst.msk [vmem:[#allocation2 + $0x30] sm:$0xff] %vm913, %v581
        %929 = vst.msk [vmem:[#allocation2 + $0x38] sm:$0xff] %vm913, %v582
        %s930 = scalar_lea.vmem [#allocation5], 32
        %v931 = vld [vmem:[%s930] sm:$0xff]
        %v932 = vld [vmem:[%s930 + $0x8] sm:$0xff]
        %v933 = vld [vmem:[%s930 + $0x10] sm:$0xff]
        %v934 = vld [vmem:[%s930 + $0x18] sm:$0xff]
        %935 = vrot.lane.b32.xlu0 %v448, 96
        %v936 = vpop.permute.xlu0 %935
        %937 = vrot.lane.b32.xlu0 %v449, 96
        %v938 = vpop.permute.xlu0 %937
        %939 = vrot.lane.b32.xlu0 %v450, 96
        %v940 = vpop.permute.xlu0 %939
        %941 = vrot.lane.b32.xlu0 %v451, 96
        %v942 = vpop.permute.xlu0 %941
        %v944 = vsel %vm452, %v931, 0
        %v947 = vsel %vm452, %v932, 0
        %v950 = vsel %vm452, %v933, 0
        %v953 = vsel %vm452, %v934, 0
        %v956 = vsel %vm452, %v936, 0
        %v959 = vsel %vm452, %v938, 0
        %v962 = vsel %vm452, %v940, 0
        %v965 = vsel %vm452, %v942, 0
        %967 = vmatprep.subr.bf16.mxu0 0
        %968 = vmatpush1.bf16.xpose.msra.mxu0 %v956
        %969 = vmatprep.subr.bf16.mxu0 0
        %970 = vmatpush1.bf16.xpose.msra.mxu0 %v959
        %971 = vmatprep.subr.bf16.mxu0 0
        %972 = vmatpush1.bf16.xpose.msra.mxu0 %v962
        %973 = vmatprep.subr.bf16.mxu0 0
        %974 = vmatpush1.bf16.xpose.msra.mxu0 %v965
        %975 = vmatprep.subr.bf16.mxu0 0
        %976 = vmatpush1.bf16.xpose.msra.mxu0 0
        %977 = vmatprep.subr.bf16.mxu0 0
        %978 = vmatpush1.bf16.xpose.msra.mxu0 0
        %979 = vmatprep.subr.bf16.mxu0 0
        %980 = vmatpush1.bf16.xpose.msra.mxu0 0
        %981 = vmatprep.subr.bf16.mxu0 0
        %982 = vmatpush1.bf16.xpose.msra.mxu0 0
        %983 = vmatprep.subr.bf16.mxu0 0
        %984 = vmatpush1.bf16.xpose.msra.mxu0 0
        %985 = vmatprep.subr.bf16.mxu0 0
        %986 = vmatpush1.bf16.xpose.msra.mxu0 0
        %987 = vmatprep.subr.bf16.mxu0 0
        %988 = vmatpush1.bf16.xpose.msra.mxu0 0
        %989 = vmatprep.subr.bf16.mxu0 0
        %990 = vmatpush1.bf16.xpose.msra.mxu0 0
        %991 = vmatprep.subr.bf16.mxu0 0
        %992 = vmatpush1.bf16.xpose.msra.mxu0 0
        %993 = vmatprep.subr.bf16.mxu0 0
        %994 = vmatpush1.bf16.xpose.msra.mxu0 0
        %995 = vmatprep.subr.bf16.mxu0 0
        %996 = vmatpush1.bf16.xpose.msra.mxu0 0
        %997 = vmatprep.subr.bf16.mxu0 0
        %998 = vmatpush1.bf16.xpose.msra.mxu0 0
        %999 = vmatprep.mubr.bf16.mxu0 0
        %1000 = vmatmul.mubr.bf16.gmra.mrb[0].mxu0 %v944
        %v1001 = vpop.f32.mrb[0].mxu0
        %v1002 = vadd.f32 0.0, %v1001
        %v1003 = vpop.f32.mrb[0].mxu0
        %v1004 = vpop.f32.mrb[0].mxu0
        %v1005 = vadd.f32 0.0, %v1004
        %v1006 = vpop.f32.mrb[0].mxu0
        %1007 = vmatprep.mubr.bf16.mxu0 0
        %1008 = vmatmul.mubr.bf16.gmra.mrb[0].mxu0 %v947
        %v1009 = vpop.f32.mrb[0].mxu0
        %v1010 = vadd.f32 0.0, %v1009
        %v1011 = vpop.f32.mrb[0].mxu0
        %v1012 = vpop.f32.mrb[0].mxu0
        %v1013 = vadd.f32 0.0, %v1012
        %v1014 = vpop.f32.mrb[0].mxu0
        %1015 = vmatprep.mubr.bf16.mxu0 0
        %1016 = vmatmul.mubr.bf16.gmra.mrb[0].mxu0 %v950
        %v1017 = vpop.f32.mrb[0].mxu0
        %v1018 = vadd.f32 0.0, %v1017
        %v1019 = vpop.f32.mrb[0].mxu0
        %v1020 = vpop.f32.mrb[0].mxu0
        %v1021 = vadd.f32 0.0, %v1020
        %v1022 = vpop.f32.mrb[0].mxu0
        %1023 = vmatprep.mubr.bf16.mxu0 0
        %1024 = vmatmul.mubr.bf16.gmra.mrb[0].mxu0 %v953
        %v1025 = vpop.f32.mrb[0].mxu0
        %v1026 = vadd.f32 0.0, %v1025
        %v1027 = vpop.f32.mrb[0].mxu0
        %v1028 = vpop.f32.mrb[0].mxu0
        %v1029 = vadd.f32 0.0, %v1028
        %v1030 = vpop.f32.mrb[0].mxu0
        %1031 = vdwg.mxu0
        %s1032 = scalar_lea.vmem [#allocation2], 64
        %v1033 = vld [vmem:[%s1032] sm:$0xff]
        %v1034 = vld [vmem:[%s1032 + $0x8] sm:$0xff]
        %v1035 = vld [vmem:[%s1032 + $0x10] sm:$0xff]
        %v1036 = vld [vmem:[%s1032 + $0x18] sm:$0xff]
        %v1037 = vld [vmem:[%s1032 + $0x20] sm:$0xff]
        %v1038 = vld [vmem:[%s1032 + $0x28] sm:$0xff]
        %v1039 = vld [vmem:[%s1032 + $0x30] sm:$0xff]
        %v1040 = vld [vmem:[%s1032 + $0x38] sm:$0xff]
        %v1041 = vsel %vm550, %v1002, -inf
        %1042 = vmax.xlane.f32.xlu0 %v1041
        %v1043 = vpop.xlane.xlu0 %1042
        %v1044 = vsel %vm550, %v1005, -inf
        %1045 = vmax.xlane.f32.xlu0 %v1044
        %v1046 = vpop.xlane.xlu0 %1045
        %v1047 = vsel %vm550, %v1010, -inf
        %1048 = vmax.xlane.f32.xlu0 %v1047
        %v1049 = vpop.xlane.xlu0 %1048
        %v1050 = vsel %vm550, %v1013, -inf
        %1051 = vmax.xlane.f32.xlu0 %v1050
        %v1052 = vpop.xlane.xlu0 %1051
        %v1053 = vsel %vm550, %v1018, -inf
        %1054 = vmax.xlane.f32.xlu0 %v1053
        %v1055 = vpop.xlane.xlu0 %1054
        %v1056 = vsel %vm550, %v1021, -inf
        %1057 = vmax.xlane.f32.xlu0 %v1056
        %v1058 = vpop.xlane.xlu0 %1057
        %v1059 = vsel %vm550, %v1026, -inf
        %1060 = vmax.xlane.f32.xlu0 %v1059
        %v1061 = vpop.xlane.xlu0 %1060
        %v1062 = vsel %vm550, %v1029, -inf
        %1063 = vmax.xlane.f32.xlu0 %v1062
        %v1064 = vpop.xlane.xlu0 %1063
        %v1065 = vmax.f32 %v1033, %v1043
        %v1066 = vmax.f32 %v1034, %v1046
        %v1067 = vmax.f32 %v1035, %v1049
        %v1068 = vmax.f32 %v1036, %v1052
        %v1069 = vmax.f32 %v1037, %v1055
        %v1070 = vmax.f32 %v1038, %v1058
        %v1071 = vmax.f32 %v1039, %v1061
        %v1072 = vmax.f32 %v1040, %v1064
        %v1073 = vsub.f32 %v1033, %v1065
        %v1074 = vsub.f32 %v1034, %v1066
        %v1075 = vsub.f32 %v1035, %v1067
        %v1076 = vsub.f32 %v1036, %v1068
        %v1077 = vsub.f32 %v1037, %v1069
        %v1078 = vsub.f32 %v1038, %v1070
        %v1079 = vsub.f32 %v1039, %v1071
        %v1080 = vsub.f32 %v1040, %v1072
        %v1081 = vmul.f32 %v1073, 1.442695
        %v1082 = vpow.pop %v1081
        %v1083 = vmul.f32 %v1074, 1.442695
        %v1084 = vpow.pop %v1083
        %v1085 = vmul.f32 %v1075, 1.442695
        %v1086 = vpow.pop %v1085
        %v1087 = vmul.f32 %v1076, 1.442695
        %v1088 = vpow.pop %v1087
        %v1089 = vmul.f32 %v1077, 1.442695
        %v1090 = vpow.pop %v1089
        %v1091 = vmul.f32 %v1078, 1.442695
        %v1092 = vpow.pop %v1091
        %v1093 = vmul.f32 %v1079, 1.442695
        %v1094 = vpow.pop %v1093
        %v1095 = vmul.f32 %v1080, 1.442695
        %v1096 = vpow.pop %v1095
        %1098 = vset.pattern.permute.xlu0 0
        %1099 = vperm.xlu0 %1098, %v1065
        %v1100 = vpop.permute.xlu0 %1099
        %1103 = vset.pattern.permute.xlu0 0
        %1104 = vperm.xlu0 %1103, %v1066
        %v1105 = vpop.permute.xlu0 %1104
        %1108 = vset.pattern.permute.xlu0 0
        %1109 = vperm.xlu0 %1108, %v1067
        %v1110 = vpop.permute.xlu0 %1109
        %1113 = vset.pattern.permute.xlu0 0
        %1114 = vperm.xlu0 %1113, %v1068
        %v1115 = vpop.permute.xlu0 %1114
        %1118 = vset.pattern.permute.xlu0 0
        %1119 = vperm.xlu0 %1118, %v1069
        %v1120 = vpop.permute.xlu0 %1119
        %1123 = vset.pattern.permute.xlu0 0
        %1124 = vperm.xlu0 %1123, %v1070
        %v1125 = vpop.permute.xlu0 %1124
        %1128 = vset.pattern.permute.xlu0 0
        %1129 = vperm.xlu0 %1128, %v1071
        %v1130 = vpop.permute.xlu0 %1129
        %1133 = vset.pattern.permute.xlu0 0
        %1134 = vperm.xlu0 %1133, %v1072
        %v1135 = vpop.permute.xlu0 %1134
        %v1137 = vsub.f32 %v1002, %v1100
        %v1138 = vsub.f32 %v1005, %v1105
        %v1139 = vsub.f32 %v1010, %v1110
        %v1140 = vsub.f32 %v1013, %v1115
        %v1141 = vsub.f32 %v1018, %v1120
        %v1142 = vsub.f32 %v1021, %v1125
        %v1143 = vsub.f32 %v1026, %v1130
        %v1144 = vsub.f32 %v1029, %v1135
        %v1145 = vmul.f32 %v1137, 1.442695
        %v1146 = vpow.pop %v1145
        %v1147 = vmul.f32 %v1138, 1.442695
        %v1148 = vpow.pop %v1147
        %v1149 = vmul.f32 %v1139, 1.442695
        %v1150 = vpow.pop %v1149
        %v1151 = vmul.f32 %v1140, 1.442695
        %v1152 = vpow.pop %v1151
        %v1153 = vmul.f32 %v1141, 1.442695
        %v1154 = vpow.pop %v1153
        %v1155 = vmul.f32 %v1142, 1.442695
        %v1156 = vpow.pop %v1155
        %v1157 = vmul.f32 %v1143, 1.442695
        %v1158 = vpow.pop %v1157
        %v1159 = vmul.f32 %v1144, 1.442695
        %v1160 = vpow.pop %v1159
        %v1161 = vpack.c.bf16 %v1148, %v1146
        %v1162 = vpack.c.bf16 %v1152, %v1150
        %v1163 = vpack.c.bf16 %v1156, %v1154
        %v1164 = vpack.c.bf16 %v1160, %v1158
        %1165 = vrot.lane.b32.xlu0 %v691, 96
        %v1166 = vpop.permute.xlu0 %1165
        %1167 = vrot.lane.b32.xlu0 %v692, 96
        %v1168 = vpop.permute.xlu0 %1167
        %1169 = vrot.lane.b32.xlu0 %v693, 96
        %v1170 = vpop.permute.xlu0 %1169
        %1171 = vrot.lane.b32.xlu0 %v694, 96
        %v1172 = vpop.permute.xlu0 %1171
        %v1174 = vsel %vm452, %v1166, 1065369472
        %v1177 = vsel %vm452, %v1168, 1065369472
        %v1180 = vsel %vm452, %v1170, 1065369472
        %v1183 = vsel %vm452, %v1172, 1065369472
        %v1186 = vsel %vm550, %v1161, 0
        %v1189 = vsel %vm550, %v1162, 0
        %v1192 = vsel %vm550, %v1163, 0
        %v1195 = vsel %vm550, %v1164, 0
        %1197 = vmatprep.subr.bf16.mxu0 0
        %1198 = vmatpush1.bf16.msra.mxu0 %v1174
        %1199 = vmatprep.subr.bf16.mxu0 0
        %1200 = vmatpush1.bf16.msra.mxu0 %v1177
        %1201 = vmatprep.subr.bf16.mxu0 0
        %1202 = vmatpush1.bf16.msra.mxu0 %v1180
        %1203 = vmatprep.subr.bf16.mxu0 0
        %1204 = vmatpush1.bf16.msra.mxu0 %v1183
        %1205 = vmatprep.subr.bf16.mxu0 0
        %1206 = vmatpush1.bf16.msra.mxu0 0
        %1207 = vmatprep.subr.bf16.mxu0 0
        %1208 = vmatpush1.bf16.msra.mxu0 0
        %1209 = vmatprep.subr.bf16.mxu0 0
        %1210 = vmatpush1.bf16.msra.mxu0 0
        %1211 = vmatprep.subr.bf16.mxu0 0
        %1212 = vmatpush1.bf16.msra.mxu0 0
        %1213 = vmatprep.subr.bf16.mxu0 0
        %1214 = vmatpush1.bf16.msra.mxu0 0
        %1215 = vmatprep.subr.bf16.mxu0 0
        %1216 = vmatpush1.bf16.msra.mxu0 0
        %1217 = vmatprep.subr.bf16.mxu0 0
        %1218 = vmatpush1.bf16.msra.mxu0 0
        %1219 = vmatprep.subr.bf16.mxu0 0
        %1220 = vmatpush1.bf16.msra.mxu0 0
        %1221 = vmatprep.subr.bf16.mxu0 0
        %1222 = vmatpush1.bf16.msra.mxu0 0
        %1223 = vmatprep.subr.bf16.mxu0 0
        %1224 = vmatpush1.bf16.msra.mxu0 0
        %1225 = vmatprep.subr.bf16.mxu0 0
        %1226 = vmatpush1.bf16.msra.mxu0 0
        %1227 = vmatprep.subr.bf16.mxu0 0
        %1228 = vmatpush1.bf16.msra.mxu0 0
        %1229 = vmatprep.mubr.bf16.mxu0 0
        %1230 = vmatmul.mubr.bf16.gmra.mrb[0].mxu0 %v1186
        %v1231 = vpop.f32.mrb[0].mxu0
        %v1232 = vadd.f32 0.0, %v1231
        %v1233 = vpop.f32.mrb[0].mxu0
        %v1234 = vpop.f32.mrb[0].mxu0
        %v1235 = vadd.f32 0.0, %v1234
        %v1236 = vpop.f32.mrb[0].mxu0
        %1237 = vmatprep.mubr.bf16.mxu0 0
        %1238 = vmatmul.mubr.bf16.gmra.mrb[0].mxu0 %v1189
        %v1239 = vpop.f32.mrb[0].mxu0
        %v1240 = vadd.f32 0.0, %v1239
        %v1241 = vpop.f32.mrb[0].mxu0
        %v1242 = vpop.f32.mrb[0].mxu0
        %v1243 = vadd.f32 0.0, %v1242
        %v1244 = vpop.f32.mrb[0].mxu0
        %1245 = vmatprep.mubr.bf16.mxu0 0
        %1246 = vmatmul.mubr.bf16.gmra.mrb[0].mxu0 %v1192
        %v1247 = vpop.f32.mrb[0].mxu0
        %v1248 = vadd.f32 0.0, %v1247
        %v1249 = vpop.f32.mrb[0].mxu0
        %v1250 = vpop.f32.mrb[0].mxu0
        %v1251 = vadd.f32 0.0, %v1250
        %v1252 = vpop.f32.mrb[0].mxu0
        %1253 = vmatprep.mubr.bf16.mxu0 0
        %1254 = vmatmul.mubr.bf16.gmra.mrb[0].mxu0 %v1195
        %v1255 = vpop.f32.mrb[0].mxu0
        %v1256 = vadd.f32 0.0, %v1255
        %v1257 = vpop.f32.mrb[0].mxu0
        %v1258 = vpop.f32.mrb[0].mxu0
        %v1259 = vadd.f32 0.0, %v1258
        %v1260 = vpop.f32.mrb[0].mxu0
        %1261 = vdwg.mxu0
        %s1262 = scalar_lea.vmem [#allocation4], 64
        %v1263 = vld [vmem:[%s1262] sm:$0xff]
        %v1264 = vld [vmem:[%s1262 + $0x8] sm:$0xff]
        %v1265 = vld [vmem:[%s1262 + $0x10] sm:$0xff]
        %v1266 = vld [vmem:[%s1262 + $0x18] sm:$0xff]
        %v1267 = vld [vmem:[%s1262 + $0x20] sm:$0xff]
        %v1268 = vld [vmem:[%s1262 + $0x28] sm:$0xff]
        %v1269 = vld [vmem:[%s1262 + $0x30] sm:$0xff]
        %v1270 = vld [vmem:[%s1262 + $0x38] sm:$0xff]
        %1272 = vset.pattern.permute.xlu0 0
        %1273 = vperm.xlu0 %1272, %v1082
        %v1274 = vpop.permute.xlu0 %1273
        %1277 = vset.pattern.permute.xlu0 0
        %1278 = vperm.xlu0 %1277, %v1084
        %v1279 = vpop.permute.xlu0 %1278
        %1282 = vset.pattern.permute.xlu0 0
        %1283 = vperm.xlu0 %1282, %v1086
        %v1284 = vpop.permute.xlu0 %1283
        %1287 = vset.pattern.permute.xlu0 0
        %1288 = vperm.xlu0 %1287, %v1088
        %v1289 = vpop.permute.xlu0 %1288
        %1292 = vset.pattern.permute.xlu0 0
        %1293 = vperm.xlu0 %1292, %v1090
        %v1294 = vpop.permute.xlu0 %1293
        %1297 = vset.pattern.permute.xlu0 0
        %1298 = vperm.xlu0 %1297, %v1092
        %v1299 = vpop.permute.xlu0 %1298
        %1302 = vset.pattern.permute.xlu0 0
        %1303 = vperm.xlu0 %1302, %v1094
        %v1304 = vpop.permute.xlu0 %1303
        %1307 = vset.pattern.permute.xlu0 0
        %1308 = vperm.xlu0 %1307, %v1096
        %v1309 = vpop.permute.xlu0 %1308
        %v1311 = vmul.f32 %v1274, %v1263
        %v1312 = vmul.f32 %v1279, %v1264
        %v1313 = vmul.f32 %v1284, %v1265
        %v1314 = vmul.f32 %v1289, %v1266
        %v1315 = vmul.f32 %v1294, %v1267
        %v1316 = vmul.f32 %v1299, %v1268
        %v1317 = vmul.f32 %v1304, %v1269
        %v1318 = vmul.f32 %v1309, %v1270
        %v1319 = vadd.f32 %v1311, %v1232
        %v1320 = vadd.f32 %v1312, %v1235
        %v1321 = vadd.f32 %v1313, %v1240
        %v1322 = vadd.f32 %v1314, %v1243
        %v1323 = vadd.f32 %v1315, %v1248
        %v1324 = vadd.f32 %v1316, %v1251
        %v1325 = vadd.f32 %v1317, %v1256
        %v1326 = vadd.f32 %v1318, %v1259
        %1327 = vst.msk [vmem:[%s1262] sm:$0xff] %vm452, %v1319
        %1328 = vst.msk [vmem:[%s1262 + $0x8] sm:$0xff] %vm452, %v1320
        %1329 = vst.msk [vmem:[%s1262 + $0x10] sm:$0xff] %vm452, %v1321
        %1330 = vst.msk [vmem:[%s1262 + $0x18] sm:$0xff] %vm452, %v1322
        %1331 = vst.msk [vmem:[%s1262 + $0x20] sm:$0xff] %vm452, %v1323
        %1332 = vst.msk [vmem:[%s1262 + $0x28] sm:$0xff] %vm452, %v1324
        %1333 = vst.msk [vmem:[%s1262 + $0x30] sm:$0xff] %vm452, %v1325
        %1334 = vst.msk [vmem:[%s1262 + $0x38] sm:$0xff] %vm452, %v1326
        %s1335 = scalar_lea.vmem [#allocation3], 64
        %v1336 = vld [vmem:[%s1335] sm:$0xff]
        %v1337 = vld [vmem:[%s1335 + $0x8] sm:$0xff]
        %v1338 = vld [vmem:[%s1335 + $0x10] sm:$0xff]
        %v1339 = vld [vmem:[%s1335 + $0x18] sm:$0xff]
        %v1340 = vld [vmem:[%s1335 + $0x20] sm:$0xff]
        %v1341 = vld [vmem:[%s1335 + $0x28] sm:$0xff]
        %v1342 = vld [vmem:[%s1335 + $0x30] sm:$0xff]
        %v1343 = vld [vmem:[%s1335 + $0x38] sm:$0xff]
        %v1344 = vmul.f32 %v1082, %v1336
        %v1345 = vmul.f32 %v1084, %v1337
        %v1346 = vmul.f32 %v1086, %v1338
        %v1347 = vmul.f32 %v1088, %v1339
        %v1348 = vmul.f32 %v1090, %v1340
        %v1349 = vmul.f32 %v1092, %v1341
        %v1350 = vmul.f32 %v1094, %v1342
        %v1351 = vmul.f32 %v1096, %v1343
        %1360 = vrot.lane.b32.xlu0 %v1232, 96
        %v1361 = vpop.permute.xlu0 %1360
        %1362 = vrot.lane.b32.xlu0 %v1235, 96
        %v1363 = vpop.permute.xlu0 %1362
        %1364 = vrot.lane.b32.xlu0 %v1240, 96
        %v1365 = vpop.permute.xlu0 %1364
        %1366 = vrot.lane.b32.xlu0 %v1243, 96
        %v1367 = vpop.permute.xlu0 %1366
        %1368 = vrot.lane.b32.xlu0 %v1248, 96
        %v1369 = vpop.permute.xlu0 %1368
        %1370 = vrot.lane.b32.xlu0 %v1251, 96
        %v1371 = vpop.permute.xlu0 %1370
        %1372 = vrot.lane.b32.xlu0 %v1256, 96
        %v1373 = vpop.permute.xlu0 %1372
        %1374 = vrot.lane.b32.xlu0 %v1259, 96
        %v1375 = vpop.permute.xlu0 %1374
        %v1384 = vadd.f32 %v1344, %v1361
        %v1385 = vadd.f32 %v1345, %v1363
        %v1386 = vadd.f32 %v1346, %v1365
        %v1387 = vadd.f32 %v1347, %v1367
        %v1388 = vadd.f32 %v1348, %v1369
        %v1389 = vadd.f32 %v1349, %v1371
        %v1390 = vadd.f32 %v1350, %v1373
        %v1391 = vadd.f32 %v1351, %v1375
        %1392 = vst.msk [vmem:[%s1335] sm:$0xff] %vm913, %v1384
        %1393 = vst.msk [vmem:[%s1335 + $0x8] sm:$0xff] %vm913, %v1385
        %1394 = vst.msk [vmem:[%s1335 + $0x10] sm:$0xff] %vm913, %v1386
        %1395 = vst.msk [vmem:[%s1335 + $0x18] sm:$0xff] %vm913, %v1387
        %1396 = vst.msk [vmem:[%s1335 + $0x20] sm:$0xff] %vm913, %v1388
        %1397 = vst.msk [vmem:[%s1335 + $0x28] sm:$0xff] %vm913, %v1389
        %1398 = vst.msk [vmem:[%s1335 + $0x30] sm:$0xff] %vm913, %v1390
        %1399 = vst.msk [vmem:[%s1335 + $0x38] sm:$0xff] %vm913, %v1391
        %1400 = vst.msk [vmem:[%s1032] sm:$0xff] %vm913, %v1065
        %1401 = vst.msk [vmem:[%s1032 + $0x8] sm:$0xff] %vm913, %v1066
        %1402 = vst.msk [vmem:[%s1032 + $0x10] sm:$0xff] %vm913, %v1067
        %1403 = vst.msk [vmem:[%s1032 + $0x18] sm:$0xff] %vm913, %v1068
        %1404 = vst.msk [vmem:[%s1032 + $0x20] sm:$0xff] %vm913, %v1069
        %1405 = vst.msk [vmem:[%s1032 + $0x28] sm:$0xff] %vm913, %v1070
        %1406 = vst.msk [vmem:[%s1032 + $0x30] sm:$0xff] %vm913, %v1071
        %1407 = vst.msk [vmem:[%s1032 + $0x38] sm:$0xff] %vm913, %v1072
        // Predicated region
        $region49: #{tpu_custom_call.1} parent=31 // pred_check
          %p1408 = pneg %p305
        $region50: #{tpu_custom_call.1} parent=31 // pred_check_branch
          %1410 = sbr.rel (%p1408) target = $region52
        $region51: #{tpu_custom_call.1} parent=31 // pred_region
          %v1411 = vld [vmem:[#allocation3] sm:$0xff]
          %v1412 = vld [vmem:[#allocation3 + $0x8] sm:$0xff]
          %v1413 = vld [vmem:[#allocation3 + $0x10] sm:$0xff]
          %v1414 = vld [vmem:[#allocation3 + $0x18] sm:$0xff]
          %v1415 = vld [vmem:[#allocation3 + $0x20] sm:$0xff]
          %v1416 = vld [vmem:[#allocation3 + $0x28] sm:$0xff]
          %v1417 = vld [vmem:[#allocation3 + $0x30] sm:$0xff]
          %v1418 = vld [vmem:[#allocation3 + $0x38] sm:$0xff]
          %v1419 = vrcp.pop %v1411
          %v1420 = vrcp.pop %v1412
          %v1421 = vrcp.pop %v1413
          %v1422 = vrcp.pop %v1414
          %v1423 = vrcp.pop %v1415
          %v1424 = vrcp.pop %v1416
          %v1425 = vrcp.pop %v1417
          %v1426 = vrcp.pop %v1418
          %v1427 = vld [vmem:[#allocation4] sm:$0xff]
          %v1428 = vld [vmem:[#allocation4 + $0x8] sm:$0xff]
          %v1429 = vld [vmem:[#allocation4 + $0x10] sm:$0xff]
          %v1430 = vld [vmem:[#allocation4 + $0x18] sm:$0xff]
          %v1431 = vld [vmem:[#allocation4 + $0x20] sm:$0xff]
          %v1432 = vld [vmem:[#allocation4 + $0x28] sm:$0xff]
          %v1433 = vld [vmem:[#allocation4 + $0x30] sm:$0xff]
          %v1434 = vld [vmem:[#allocation4 + $0x38] sm:$0xff]
          %1436 = vset.pattern.permute.xlu0 0
          %1437 = vperm.xlu0 %1436, %v1419
          %v1438 = vpop.permute.xlu0 %1437
          %1441 = vset.pattern.permute.xlu0 0
          %1442 = vperm.xlu0 %1441, %v1420
          %v1443 = vpop.permute.xlu0 %1442
          %1446 = vset.pattern.permute.xlu0 0
          %1447 = vperm.xlu0 %1446, %v1421
          %v1448 = vpop.permute.xlu0 %1447
          %1451 = vset.pattern.permute.xlu0 0
          %1452 = vperm.xlu0 %1451, %v1422
          %v1453 = vpop.permute.xlu0 %1452
          %1456 = vset.pattern.permute.xlu0 0
          %1457 = vperm.xlu0 %1456, %v1423
          %v1458 = vpop.permute.xlu0 %1457
          %1461 = vset.pattern.permute.xlu0 0
          %1462 = vperm.xlu0 %1461, %v1424
          %v1463 = vpop.permute.xlu0 %1462
          %1466 = vset.pattern.permute.xlu0 0
          %1467 = vperm.xlu0 %1466, %v1425
          %v1468 = vpop.permute.xlu0 %1467
          %1471 = vset.pattern.permute.xlu0 0
          %1472 = vperm.xlu0 %1471, %v1426
          %v1473 = vpop.permute.xlu0 %1472
          %v1475 = vmul.f32 %v1427, %v1438
          %v1476 = vmul.f32 %v1428, %v1443
          %v1477 = vmul.f32 %v1429, %v1448
          %v1478 = vmul.f32 %v1430, %v1453
          %v1479 = vmul.f32 %v1431, %v1458
          %v1480 = vmul.f32 %v1432, %v1463
          %v1481 = vmul.f32 %v1433, %v1468
          %v1482 = vmul.f32 %v1434, %v1473
          %v1483 = vld [vmem:[%s1335] sm:$0xff]
          %v1484 = vld [vmem:[%s1335 + $0x8] sm:$0xff]
          %v1485 = vld [vmem:[%s1335 + $0x10] sm:$0xff]
          %v1486 = vld [vmem:[%s1335 + $0x18] sm:$0xff]
          %v1487 = vld [vmem:[%s1335 + $0x20] sm:$0xff]
          %v1488 = vld [vmem:[%s1335 + $0x28] sm:$0xff]
          %v1489 = vld [vmem:[%s1335 + $0x30] sm:$0xff]
          %v1490 = vld [vmem:[%s1335 + $0x38] sm:$0xff]
          %v1491 = vrcp.pop %v1483
          %v1492 = vrcp.pop %v1484
          %v1493 = vrcp.pop %v1485
          %v1494 = vrcp.pop %v1486
          %v1495 = vrcp.pop %v1487
          %v1496 = vrcp.pop %v1488
          %v1497 = vrcp.pop %v1489
          %v1498 = vrcp.pop %v1490
          %v1499 = vld [vmem:[%s1262] sm:$0xff]
          %v1500 = vld [vmem:[%s1262 + $0x8] sm:$0xff]
          %v1501 = vld [vmem:[%s1262 + $0x10] sm:$0xff]
          %v1502 = vld [vmem:[%s1262 + $0x18] sm:$0xff]
          %v1503 = vld [vmem:[%s1262 + $0x20] sm:$0xff]
          %v1504 = vld [vmem:[%s1262 + $0x28] sm:$0xff]
          %v1505 = vld [vmem:[%s1262 + $0x30] sm:$0xff]
          %v1506 = vld [vmem:[%s1262 + $0x38] sm:$0xff]
          %1508 = vset.pattern.permute.xlu0 0
          %1509 = vperm.xlu0 %1508, %v1491
          %v1510 = vpop.permute.xlu0 %1509
          %1513 = vset.pattern.permute.xlu0 0
          %1514 = vperm.xlu0 %1513, %v1492
          %v1515 = vpop.permute.xlu0 %1514
          %1518 = vset.pattern.permute.xlu0 0
          %1519 = vperm.xlu0 %1518, %v1493
          %v1520 = vpop.permute.xlu0 %1519
          %1523 = vset.pattern.permute.xlu0 0
          %1524 = vperm.xlu0 %1523, %v1494
          %v1525 = vpop.permute.xlu0 %1524
          %1528 = vset.pattern.permute.xlu0 0
          %1529 = vperm.xlu0 %1528, %v1495
          %v1530 = vpop.permute.xlu0 %1529
          %1533 = vset.pattern.permute.xlu0 0
          %1534 = vperm.xlu0 %1533, %v1496
          %v1535 = vpop.permute.xlu0 %1534
          %1538 = vset.pattern.permute.xlu0 0
          %1539 = vperm.xlu0 %1538, %v1497
          %v1540 = vpop.permute.xlu0 %1539
          %1543 = vset.pattern.permute.xlu0 0
          %1544 = vperm.xlu0 %1543, %v1498
          %v1545 = vpop.permute.xlu0 %1544
          %v1547 = vmul.f32 %v1499, %v1510
          %v1548 = vmul.f32 %v1500, %v1515
          %v1549 = vmul.f32 %v1501, %v1520
          %v1550 = vmul.f32 %v1502, %v1525
          %v1551 = vmul.f32 %v1503, %v1530
          %v1552 = vmul.f32 %v1504, %v1535
          %v1553 = vmul.f32 %v1505, %v1540
          %v1554 = vmul.f32 %v1506, %v1545
          %1563 = vrot.lane.b32.xlu0 %v1547, 32
          %v1564 = vpop.permute.xlu0 %1563
          %1565 = vrot.lane.b32.xlu0 %v1548, 32
          %v1566 = vpop.permute.xlu0 %1565
          %1567 = vrot.lane.b32.xlu0 %v1549, 32
          %v1568 = vpop.permute.xlu0 %1567
          %1569 = vrot.lane.b32.xlu0 %v1550, 32
          %v1570 = vpop.permute.xlu0 %1569
          %1571 = vrot.lane.b32.xlu0 %v1551, 32
          %v1572 = vpop.permute.xlu0 %1571
          %1573 = vrot.lane.b32.xlu0 %v1552, 32
          %v1574 = vpop.permute.xlu0 %1573
          %1575 = vrot.lane.b32.xlu0 %v1553, 32
          %v1576 = vpop.permute.xlu0 %1575
          %1577 = vrot.lane.b32.xlu0 %v1554, 32
          %v1578 = vpop.permute.xlu0 %1577
          %v1587 = vsel %vm452, %v1475, %v1564
          %v1588 = vsel %vm452, %v1476, %v1566
          %v1589 = vsel %vm452, %v1477, %v1568
          %v1590 = vsel %vm452, %v1478, %v1570
          %v1591 = vsel %vm452, %v1479, %v1572
          %v1592 = vsel %vm452, %v1480, %v1574
          %v1593 = vsel %vm452, %v1481, %v1576
          %v1594 = vsel %vm452, %v1482, %v1578
          %1595 = vst.msk [vmem:[%s298] sm:$0xff] %vm550, %v1587
          %1596 = vst.msk [vmem:[%s298 + $0x8] sm:$0xff] %vm550, %v1588
          %1597 = vst.msk [vmem:[%s298 + $0x10] sm:$0xff] %vm550, %v1589
          %1598 = vst.msk [vmem:[%s298 + $0x18] sm:$0xff] %vm550, %v1590
          %1599 = vst.msk [vmem:[%s298 + $0x20] sm:$0xff] %vm550, %v1591
          %1600 = vst.msk [vmem:[%s298 + $0x28] sm:$0xff] %vm550, %v1592
          %1601 = vst.msk [vmem:[%s298 + $0x30] sm:$0xff] %vm550, %v1593
          %1602 = vst.msk [vmem:[%s298 + $0x38] sm:$0xff] %vm550, %v1594
        $region52: #{tpu_custom_call.1} parent=31 // pred_fallthru
          _
        %s1603 = sand.u32 %s136, 1
        %s1604 = scalar_lea.sflag [#allocation8], %s1603
        %s1605 = sand.u32 %s136, 1
        %s1606 = smul.addr %s1605, 64
        %s1607 = scalar_lea.vmem [#allocation12], %s1606
        // Predicated region
        $region53: #{tpu_custom_call.1} parent=31 // pred_check
          %p1608 = pneg %p146
        $region54: #{tpu_custom_call.1} parent=31 // pred_check_branch
          %1610 = sbr.rel (%p1608) target = $region56
        $region55: #{tpu_custom_call.1} parent=31 // pred_region
          %s1611 = smul.u32 8, %s29
          %s1613 = ssub.s32 1024, 1024
          %1614 = vsyncadd %s1604, %s1613
          %s1615 = smul.addr %s28, 8
          %s1616 = sadd.s32 %s1611, %s1615
          %s1617 = smul.addr %s1616, 128
          %s1618 = scalar_lea.hbm %s3, %s1617
          %s1619 = sshll.u32 %s1607, 4
          %s1620 = int_to_ptr.vmem [resolvable:$true] %s1619
          %1625 = dma.vmem_to_hbm [thread:$0]  %s1620, 1024, %s1618, %s1604, 128, 128, 8
        $region56: #{tpu_custom_call.1} parent=31 // pred_fallthru
          _
      $region32: #{tpu_custom_call.1} parent=5 // pred_fallthru
        _
      %p1626 = scmp.le.s32.totalorder 2, %s18
      // Predicated region
      $region57: #{tpu_custom_call.1} parent=5 // pred_check
        %p1627 = pneg %p1626
      $region58: #{tpu_custom_call.1} parent=5 // pred_check_branch
        %1629 = sbr.rel (%p1627) target = $region60
      $region59: #{tpu_custom_call.1} parent=5 // pred_region
        %s1630 = ssub.s32 %s18, 2
        // Predicated region
        $region61: #{tpu_custom_call.1} parent=59 // pred_check
          %p1631 = pneg %p152
        $region62: #{tpu_custom_call.1} parent=59 // pred_check_branch
          %1633 = sbr.rel (%p1631) target = $region64
        $region63: #{tpu_custom_call.1} parent=59 // pred_region
          %s1634 = sand.u32 %s137, 1
          %s1635 = scalar_lea.sflag [#allocation8], %s1634
          %s1636 = sand.u32 %s137, 1
          %s1637 = smul.addr %s1636, 64
          %s1638 = scalar_lea.vmem [#allocation12], %s1637
          %1639 = dma.done %s1635, 1024
        $region64: #{tpu_custom_call.1} parent=59 // pred_fallthru
          _
      $region60: #{tpu_custom_call.1} parent=5 // pred_fallthru
        _
    $region6: #{tpu_custom_call.1} parent=1 // loop_footer
      %s22 = sadd.s32 1, %s18
    $region7: #{tpu_custom_call.1} parent=1 // loop_footer_branch
      %17 = sbr.rel target = $region3
    $region8: #{tpu_custom_call.1} parent=1 // loop_exit
      _
    %1640 = vsyncpa [#allocation7], 1
    %s1641 = scalar_lea.sflag [#allocation7], 1
    %1642 = vsyncpa %s1641, 1
    %1643 = vsyncpa [#allocation10], 1
    %s1644 = scalar_lea.sflag [#allocation10], 1
    %1645 = vsyncpa %s1644, 1
    %1646 = vsyncpa [#allocation8], 1
    %s1647 = scalar_lea.sflag [#allocation8], 1
    %1648 = vsyncpa %s1647, 1

</llo_original>
